<compile_context>
chip_gen: v5e
topology: v5e:2x2
jax: 0.10.0
libtpu: 0.0.40
codegen_flags: <defaults>
</compile_context>

<pallas_src>
import functools

import jax
import jax.numpy as jnp
from jax import lax
from jax.experimental import pallas as pl
from jax.experimental.pallas import tpu as pltpu


def _round_up(x, m):
    return (x + m - 1) // m * m


def _pick_tile(n, max_tile, align):
    """Largest multiple of `align` that divides n and is <= max_tile (n % align == 0)."""
    if n <= max_tile:
        return n
    best = align
    t = align
    while t <= max_tile:
        if n % t == 0:
            best = t
        t += align
    return best


def _hw_config():
    """Generation-aware VMEM budget / tile caps (v5e/v6e: 128 MiB, v7x: 64 MiB/TC)."""
    try:
        cap = int(pltpu.get_tpu_info().vmem_capacity_bytes)
    except Exception:
        cap = 64 * 1024 * 1024              # conservative default (v7x per-TC VMEM)
    big = cap >= 100 * 1024 * 1024          # v5e / v6e class
    return {
        "vmem_limit": int(cap * 3 // 4),    # leave headroom vs physical VMEM
        "tm_max": 512 if big else 256,
        "tn_max": 2048 if big else 1024,
    }


# ---------------------------------------------------------------------------
# Tiled matmul + bias: C = A @ B + bias.  A, B in bf16; f32 accumulation.
# Grid layout chosen so the weight matrix B is streamed from HBM exactly once.
# ---------------------------------------------------------------------------
def _matmul_bias_kernel(a_ref, b_ref, bias_ref, o_ref):
    o_ref[...] = (jnp.dot(a_ref[...], b_ref[...],
                          preferred_element_type=jnp.float32)
                  + bias_ref[...]).astype(o_ref.dtype)


def _matmul_bias(a, b, bias, *, tm_max, tn_max, vmem_limit):
    """A:(M,K) bf16, B:(K,N) bf16, bias:(1,N) f32; M%8==0, K%128==0, N%128==0."""
    M, K = a.shape
    _, N = b.shape
    assert M % 8 == 0 and K % 128 == 0 and N % 128 == 0
    tm = _pick_tile(M, tm_max, 8)      # divides M -> no post-matmul strip copy
    tn = _pick_tile(N, tn_max, 128)    # divides N

    if tn == N:
        # Whole W (+bias) resident in VMEM, fetched once; stream A row tiles.
        grid = (M // tm,)
        in_specs = [
            pl.BlockSpec((tm, K), lambda i: (i, 0)),
            pl.BlockSpec((K, N), lambda i: (0, 0)),
            pl.BlockSpec((1, N), lambda i: (0, 0)),
        ]
        out_specs = pl.BlockSpec((tm, N), lambda i: (i, 0))
        dims = ("parallel",)
    elif tm == M:
        # Whole A resident; stream W column tiles exactly once (vocab head).
        grid = (N // tn,)
        in_specs = [
            pl.BlockSpec((M, K), lambda j: (0, 0)),
            pl.BlockSpec((K, tn), lambda j: (0, j)),
            pl.BlockSpec((1, tn), lambda j: (0, j)),
        ]
        out_specs = pl.BlockSpec((M, tn), lambda j: (0, j))
        dims = ("parallel",)
    else:
        # 2-D fallback: N outermost so each W column tile is fetched once overall.
        grid = (N // tn, M // tm)
        in_specs = [
            pl.BlockSpec((tm, K), lambda j, i: (i, 0)),
            pl.BlockSpec((K, tn), lambda j, i: (0, j)),
            pl.BlockSpec((1, tn), lambda j, i: (0, j)),
        ]
        out_specs = pl.BlockSpec((tm, tn), lambda j, i: (i, j))
        dims = ("parallel", "parallel")

    return pl.pallas_call(
        _matmul_bias_kernel,
        out_shape=jax.ShapeDtypeStruct((M, N), jnp.float32),
        grid_spec=pltpu.PrefetchScalarGridSpec(
            num_scalar_prefetch=0,
            grid=grid, in_specs=in_specs, out_specs=out_specs),
        compiler_params=pltpu.CompilerParams(
            dimension_semantics=dims, vmem_limit_bytes=vmem_limit),
    )(a, b, bias)


# ---------------------------------------------------------------------------
# LSTM recurrence kernel: `chunk` timesteps per grid iteration, batch-tiled.
# ---------------------------------------------------------------------------
def _lstm_recurrence_kernel(xg_ref, whh_ref, h_out_ref, h_sc, c_sc, *,
                            chunk, hidden, unroll):
    """xg_ref   : (chunk, Bt, 4*Hp)  f32  precomputed x_t @ W_ih^T + (b_ih + b_hh)
       whh_ref  : (Hp, 4*Hp)         bf16 recurrent weights (gate-padded; constant
                                     block index -> DMA'd once for the whole grid)
       h_out_ref: (chunk, Bt, Hp)    f32  hidden state for each timestep in chunk
       h_sc/c_sc: (Bt, Hp)           f32  recurrent state, persists across chunks."""
    @pl.when(pl.program_id(1) == 0)   # first time-chunk of this batch tile
    def _():
        h_sc[...] = jnp.zeros_like(h_sc)
        c_sc[...] = jnp.zeros_like(c_sc)

    whh = whh_ref[...]                # hoisted: loaded once per chunk
    H = hidden

    def step(t, carry):
        h_prev, c_prev = carry
        # PyTorch gate order [i, f, g, o]; gate slices are 128-lane aligned (Hp%128==0).
        gates = xg_ref[t] + jnp.dot(h_prev.astype(jnp.bfloat16), whh,
                                    preferred_element_type=jnp.float32)
        i_g = jax.nn.sigmoid(gates[:, 0 * H:1 * H])
        f_g = jax.nn.sigmoid(gates[:, 1 * H:2 * H])
        g_g = jnp.tanh(gates[:, 2 * H:3 * H])
        o_g = jax.nn.sigmoid(gates[:, 3 * H:4 * H])
        c_new = f_g * c_prev + i_g * g_g
        h_new = o_g * jnp.tanh(c_new)
        h_out_ref[t] = h_new
        return h_new, c_new

    h_f, c_f = lax.fori_loop(0, chunk, step, (h_sc[...], c_sc[...]), unroll=unroll)
    h_sc[...] = h_f
    c_sc[...] = c_f


# ---------------------------------------------------------------------------
# Shape / tiling helpers
# ---------------------------------------------------------------------------
def _pick_time_chunk(T, max_chunk=32):
    """Chunk size that avoids time padding when possible (divides T)."""
    if T <= max_chunk:
        return T
    best = 0
    for c in range(8, max_chunk + 1):
        if T % c == 0:
            best = c
    if best:
        return best
    # No good divisor: minimize padded timesteps.
    best_c, best_pad = max_chunk, _round_up(T, max_chunk) - T
    for c in range(8, max_chunk + 1):
        pad = _round_up(T, c) - T
        if pad < best_pad:
            best_c, best_pad = c, pad
    return best_c


def _pick_batch_tiles(Bp):
    """2 batch tiles only when a multi-TensorCore chip is detected (v7x megacore)."""
    try:
        ncores = int(getattr(jax.devices()[0], "num_cores", 1) or 1)
    except Exception:
        ncores = 1
    if ncores >= 2 and Bp % 16 == 0:
        return 2
    return 1


def _pad_gate_weight(w, h, hp, in_dim, in_dim_p):
    """PyTorch (4h, in_dim) gate-stacked weight -> (in_dim_p, 4*hp), zero-padded
    per gate so padded hidden lanes receive exactly zero pre-activation."""
    w4 = w.reshape(4, h, in_dim)
    w4 = jnp.pad(w4, ((0, 0), (0, hp - h), (0, in_dim_p - in_dim)))
    return jnp.transpose(w4, (2, 0, 1)).reshape(in_dim_p, 4 * hp)


# ---------------------------------------------------------------------------
# Wrapper replicating DecoderRNN.forward
# ---------------------------------------------------------------------------
def decoder_rnn_forward(features, captions, params):
    """Embed captions[:, :-1], prepend the image feature as timestep 0, run a
    1-layer LSTM (h0 = c0 = 0), project hidden states to vocab logits."""
    emb_table = params["embedding"]          # (V, E)
    w_ih = params["w_ih"]                    # (4H, E)  PyTorch layout
    w_hh = params["w_hh"]                    # (4H, H)
    b_ih = params["b_ih"]                    # (4H,)
    b_hh = params["b_hh"]                    # (4H,)
    w_out = params["w_out"]                  # (V, H)
    b_out = params["b_out"]                  # (V,)

    B, E = features.shape
    H = w_hh.shape[1]
    V = w_out.shape[0]

    hw = _hw_config()

    # ---- glue (plain JAX): embedding gather + feature prepend ----
    embeds = jnp.take(emb_table, captions[:, :-1], axis=0)            # (B, T-1, E)
    x_seq = jnp.concatenate([features[:, None, :], embeds], axis=1)   # (B, T, E)
    T = x_seq.shape[1]

    # ---- vreg-aligned padded sizes: 8 sublanes / 128 lanes ----
    Bp = _round_up(B, 8)
    Ep = _round_up(E, 128)
    Hp = _round_up(H, 128)
    Vp = _round_up(V, 128)
    Tc = _pick_time_chunk(T)
    Tp = _round_up(T, Tc)
    n_btiles = _pick_batch_tiles(Bp)
    Bt = Bp // n_btiles
    unroll = True if Tc <= 16 else 8

    x_tm = jnp.transpose(x_seq, (1, 0, 2)).astype(jnp.float32)        # (T, B, E)
    x_tm = jnp.pad(x_tm, ((0, Tp - T), (0, Bp - B), (0, Ep - E)))     # (Tp, Bp, Ep)
    x_tm = x_tm.astype(jnp.bfloat16)                                   # bf16 matmul operand

    # weights in right-multiply layout; zero-padded so padded lanes stay zero
    wih_p = _pad_gate_weight(w_ih, H, Hp, E, Ep).astype(jnp.bfloat16)   # (Ep, 4Hp)
    whh_p = _pad_gate_weight(w_hh, H, Hp, H, Hp).astype(jnp.bfloat16)   # (Hp, 4Hp)
    bias_p = jnp.pad((b_ih + b_hh).reshape(4, H),
                     ((0, 0), (0, Hp - H))).reshape(1, 4 * Hp)          # (1, 4Hp) f32
    wout_p = jnp.pad(jnp.transpose(w_out),
                     ((0, Hp - H), (0, Vp - V))).astype(jnp.bfloat16)   # (Hp, Vp)
    bout_p = jnp.pad(b_out.reshape(1, V), ((0, 0), (0, Vp - V)))        # (1, Vp) f32

    # ---- 1) batched input projection over all timesteps (MXU-efficient) ----
    xg = _matmul_bias(x_tm.reshape(Tp * Bp, Ep), wih_p, bias_p,
                      tm_max=hw["tm_max"], tn_max=hw["tn_max"],
                      vmem_limit=hw["vmem_limit"])                      # (Tp*Bp, 4Hp) f32
    xg = xg.reshape(Tp, Bp, 4 * Hp)

    # ---- 2) sequential LSTM recurrence, (batch-tile, time-chunk) grid ----
    h_all = pl.pallas_call(
        functools.partial(_lstm_recurrence_kernel, chunk=Tc, hidden=Hp,
                          unroll=unroll),
        out_shape=jax.ShapeDtypeStruct((Tp, Bp, Hp), jnp.float32),
        grid_spec=pltpu.PrefetchScalarGridSpec(
            num_scalar_prefetch=0,
            grid=(n_btiles, Tp // Tc),
            in_specs=[
                pl.BlockSpec((Tc, Bt, 4 * Hp), lambda b, c: (c, b, 0)),  # xg chunk
                pl.BlockSpec((Hp, 4 * Hp), lambda b, c: (0, 0)),         # W_hh^T const
            ],
            out_specs=pl.BlockSpec((Tc, Bt, Hp), lambda b, c: (c, b, 0)),
            scratch_shapes=[
                pltpu.VMEM((Bt, Hp), jnp.float32),   # h state
                pltpu.VMEM((Bt, Hp), jnp.float32),   # c state
            ],
        ),
        compiler_params=pltpu.CompilerParams(
            # batch tiles independent (both TCs on v7x); time is a sequential recurrence
            dimension_semantics=("parallel", "arbitrary"),
            vmem_limit_bytes=hw["vmem_limit"],
        ),
    )(xg, whh_p)

    # ---- 3) vocab projection batched over all B*T rows; lands in (B, T, V) ----
    # TODO(synk): fold this small (Tp,Bp,Hp) relayout into the recurrence kernel
    #             via a per-chunk XLU transpose.
    h_bt = jnp.transpose(h_all, (1, 0, 2)).reshape(Bp * Tp, Hp).astype(jnp.bfloat16)
    logits = _matmul_bias(h_bt, wout_p, bout_p,
                          tm_max=hw["tm_max"], tn_max=hw["tn_max"],
                          vmem_limit=hw["vmem_limit"])                  # (Bp*Tp, Vp)
    # TODO(synk): callers that can consume padded logits should skip this crop
    #             (it copies the largest tensor); kept to match PyTorch semantics.
    logits = logits.reshape(Bp, Tp, Vp)[:B, :T, :V]
    return logits


def init_params(key, embed_size, hidden_size, vocab_size):
    ks = jax.random.split(key, 7)
    s_lstm = 1.0 / jnp.sqrt(hidden_size)
    s_lin = 1.0 / jnp.sqrt(hidden_size)
    return {
        "embedding": jax.random.normal(ks[0], (vocab_size, embed_size), jnp.float32),
        "w_ih": jax.random.uniform(ks[1], (4 * hidden_size, embed_size), jnp.float32,
                                   -s_lstm, s_lstm),
        "w_hh": jax.random.uniform(ks[2], (4 * hidden_size, hidden_size), jnp.float32,
                                   -s_lstm, s_lstm),
        "b_ih": jax.random.uniform(ks[3], (4 * hidden_size,), jnp.float32, -s_lstm, s_lstm),
        "b_hh": jax.random.uniform(ks[4], (4 * hidden_size,), jnp.float32, -s_lstm, s_lstm),
        "w_out": jax.random.uniform(ks[5], (vocab_size, hidden_size), jnp.float32,
                                    -s_lin, s_lin),
        "b_out": jax.random.uniform(ks[6], (vocab_size,), jnp.float32, -s_lin, s_lin),
    }


if __name__ == "__main__":
    embed_size, hidden_size, vocab_size = 32, 32, 64
    batch, seq = 2, 8  # captions length 8 -> LSTM sees 8 steps (feature + 7 embeds)

    key = jax.random.PRNGKey(0)
    k_p, k_f, k_c = jax.random.split(key, 3)

    params = init_params(k_p, embed_size, hidden_size, vocab_size)
    features = jax.random.normal(k_f, (batch, embed_size), jnp.float32)
    captions = jax.random.randint(k_c, (batch, seq), 0, vocab_size, jnp.int32)

    fwd = jax.jit(decoder_rnn_forward)
    logits = fwd(features, captions, params)
    jax.block_until_ready(logits)
    assert logits.shape == (batch, seq, vocab_size)
    print("KERNEL_OK")
</pallas_src>

<mosaic_0001>
module attributes {stable_mosaic.version = 11 : i64} {
  func.func @_matmul_bias_kernel(%arg0: i32, %arg1: memref<64x128xbf16, #tpu.memory_space<vmem>>, %arg2: memref<128x512xbf16, #tpu.memory_space<vmem>>, %arg3: memref<1x512xf32, #tpu.memory_space<vmem>>, %arg4: memref<64x512xf32, #tpu.memory_space<vmem>>) attributes {dimension_semantics = [#tpu.dimension_semantics<parallel>], iteration_bounds = array<i64: 1>, scalar_prefetch = 0 : i64, scratch_operands = 0 : i64, tpu.core_type = #tpu.core_type<tc>, window_params = [{transform_indices = @transform_0, window_bounds = array<i64: 64, 128>}, {pipeline_mode = #tpu.pipeline_mode<synchronous>, transform_indices = @transform_1, window_bounds = array<i64: 128, 512>}, {pipeline_mode = #tpu.pipeline_mode<synchronous>, transform_indices = @transform_2, window_bounds = array<i64: 1, 512>}, {transform_indices = @transform_3, window_bounds = array<i64: 64, 512>}]} {
    %c0 = arith.constant 0 : index
    %c0_0 = arith.constant 0 : index
    %0 = vector.load %arg1[%c0, %c0_0] : memref<64x128xbf16, #tpu.memory_space<vmem>>, vector<64x128xbf16>
    %c0_1 = arith.constant 0 : index
    %c0_2 = arith.constant 0 : index
    %1 = vector.load %arg2[%c0_1, %c0_2] : memref<128x512xbf16, #tpu.memory_space<vmem>>, vector<128x512xbf16>
    %cst = arith.constant dense<0.000000e+00> : vector<64x512xf32>
    %2 = tpu.matmul %0, %1, %cst {dimension_numbers = #tpu.dot_dimension_numbers<[1], [0], [0], [1], [0, 0, 1, 1], [], []>} : vector<64x128xbf16>, vector<128x512xbf16>, vector<64x512xf32> -> vector<64x512xf32>
    %c0_3 = arith.constant 0 : index
    %c0_4 = arith.constant 0 : index
    %3 = vector.load %arg3[%c0_3, %c0_4] : memref<1x512xf32, #tpu.memory_space<vmem>>, vector<1x512xf32>
    %4 = vector.broadcast %3 : vector<1x512xf32> to vector<64x512xf32>
    %5 = arith.addf %2, %4 : vector<64x512xf32>
    %c0_5 = arith.constant 0 : index
    %c0_6 = arith.constant 0 : index
    %6 = vector.load %arg4[%c0_5, %c0_6] : memref<64x512xf32, #tpu.memory_space<vmem>>, vector<64x512xf32>
    tpu.vector_store %arg4[%c0_5, %c0_6], %5 {strides = array<i32>} : memref<64x512xf32, #tpu.memory_space<vmem>>, vector<64x512xf32>,
    return
  }
  func.func @transform_0(%arg0: i32) -> (i32, i32) {
    %c0_i32 = arith.constant 0 : i32
    %c0_i32_0 = arith.constant 0 : i32
    return %arg0, %c0_i32 : i32, i32
  }
  func.func @transform_1(%arg0: i32) -> (i32, i32) {
    %c0_i32 = arith.constant 0 : i32
    %c0_i32_0 = arith.constant 0 : i32
    %c0_i32_1 = arith.constant 0 : i32
    return %c0_i32, %c0_i32_0 : i32, i32
  }
  func.func @transform_2(%arg0: i32) -> (i32, i32) {
    %c0_i32 = arith.constant 0 : i32
    %c0_i32_0 = arith.constant 0 : i32
    %c0_i32_1 = arith.constant 0 : i32
    return %c0_i32, %c0_i32_0 : i32, i32
  }
  func.func @transform_3(%arg0: i32) -> (i32, i32) {
    %c0_i32 = arith.constant 0 : i32
    %c0_i32_0 = arith.constant 0 : i32
    return %arg0, %c0_i32 : i32, i32
  }
}

module attributes {stable_mosaic.version = 11 : i64} {
  func.func @_lstm_recurrence_kernel(%arg0: i32, %arg1: i32, %arg2: memref<8x8x512xf32, #tpu.memory_space<vmem>>, %arg3: memref<128x512xbf16, #tpu.memory_space<vmem>>, %arg4: memref<8x8x128xf32, #tpu.memory_space<vmem>>, %arg5: memref<8x128xf32, #tpu.memory_space<vmem>>, %arg6: memref<8x128xf32, #tpu.memory_space<vmem>>) attributes {dimension_semantics = [#tpu.dimension_semantics<parallel>, #tpu.dimension_semantics<arbitrary>], iteration_bounds = array<i64: 1, 1>, scalar_prefetch = 0 : i64, scratch_operands = 2 : i64, tpu.core_type = #tpu.core_type<tc>, window_params = [{transform_indices = @transform_0, window_bounds = array<i64: 8, 8, 512>}, {pipeline_mode = #tpu.pipeline_mode<synchronous>, transform_indices = @transform_1, window_bounds = array<i64: 128, 512>}, {transform_indices = @transform_2, window_bounds = array<i64: 8, 8, 128>}]} {
    %c0_i32 = arith.constant 0 : i32
    %0 = arith.cmpi eq, %arg1, %c0_i32 : i32
    %1 = arith.extui %0 : i1 to i32
    %c0_i32_0 = arith.constant 0 : i32
    %2 = arith.cmpi ne, %1, %c0_i32_0 : i32
    scf.if %2 {
      %cst_74 = arith.constant 0.000000e+00 : f32
      %288 = vector.broadcast %cst_74 : f32 to vector<8x128xf32>
      %c0_75 = arith.constant 0 : index
      %c0_76 = arith.constant 0 : index
      %289 = vector.load %arg5[%c0_75, %c0_76] : memref<8x128xf32, #tpu.memory_space<vmem>>, vector<8x128xf32>
      tpu.vector_store %arg5[%c0_75, %c0_76], %288 {strides = array<i32>} : memref<8x128xf32, #tpu.memory_space<vmem>>, vector<8x128xf32>,
      %cst_77 = arith.constant 0.000000e+00 : f32
      %290 = vector.broadcast %cst_77 : f32 to vector<8x128xf32>
      %c0_78 = arith.constant 0 : index
      %c0_79 = arith.constant 0 : index
      %291 = vector.load %arg6[%c0_78, %c0_79] : memref<8x128xf32, #tpu.memory_space<vmem>>, vector<8x128xf32>
      tpu.vector_store %arg6[%c0_78, %c0_79], %290 {strides = array<i32>} : memref<8x128xf32, #tpu.memory_space<vmem>>, vector<8x128xf32>,
    } else {
    }
    %c0 = arith.constant 0 : index
    %c0_1 = arith.constant 0 : index
    %3 = vector.load %arg3[%c0, %c0_1] : memref<128x512xbf16, #tpu.memory_space<vmem>>, vector<128x512xbf16>
    %c0_2 = arith.constant 0 : index
    %c0_3 = arith.constant 0 : index
    %4 = vector.load %arg5[%c0_2, %c0_3] : memref<8x128xf32, #tpu.memory_space<vmem>>, vector<8x128xf32>
    %c0_4 = arith.constant 0 : index
    %c0_5 = arith.constant 0 : index
    %5 = vector.load %arg6[%c0_4, %c0_5] : memref<8x128xf32, #tpu.memory_space<vmem>>, vector<8x128xf32>
    %c0_i32_6 = arith.constant 0 : i32
    %6 = arith.index_cast %c0_i32_6 : i32 to index
    %c0_7 = arith.constant 0 : index
    %c0_8 = arith.constant 0 : index
    %7 = vector.load %arg2[%6, %c0_7, %c0_8] : memref<8x8x512xf32, #tpu.memory_space<vmem>>, vector<1x8x512xf32>
    %8 = vector.shape_cast %7 : vector<1x8x512xf32> to vector<8x512xf32>
    %9 = arith.truncf %4 : vector<8x128xf32> to vector<8x128xbf16>
    %cst = arith.constant dense<0.000000e+00> : vector<8x512xf32>
    %10 = tpu.matmul %9, %3, %cst {dimension_numbers = #tpu.dot_dimension_numbers<[1], [0], [0], [1], [0, 0, 1, 1], [], []>} : vector<8x128xbf16>, vector<128x512xbf16>, vector<8x512xf32> -> vector<8x512xf32>
    %11 = arith.addf %8, %10 : vector<8x512xf32>
    %12 = vector.extract_strided_slice %11 {offsets = [0, 0], sizes = [8, 128], strides = [1, 1]} : vector<8x512xf32> to vector<8x128xf32>
    %13 = arith.negf %12 : vector<8x128xf32>
    %14 = math.exp %13 : vector<8x128xf32>
    %cst_9 = arith.constant 1.000000e+00 : f32
    %15 = vector.broadcast %cst_9 : f32 to vector<8x128xf32>
    %16 = arith.addf %15, %14 : vector<8x128xf32>
    %17 = arith.divf %15, %16 : vector<8x128xf32>
    %18 = vector.extract_strided_slice %11 {offsets = [0, 128], sizes = [8, 128], strides = [1, 1]} : vector<8x512xf32> to vector<8x128xf32>
    %19 = arith.negf %18 : vector<8x128xf32>
    %20 = math.exp %19 : vector<8x128xf32>
    %cst_10 = arith.constant 1.000000e+00 : f32
    %21 = vector.broadcast %cst_10 : f32 to vector<8x128xf32>
    %22 = arith.addf %21, %20 : vector<8x128xf32>
    %23 = arith.divf %21, %22 : vector<8x128xf32>
    %24 = vector.extract_strided_slice %11 {offsets = [0, 256], sizes = [8, 128], strides = [1, 1]} : vector<8x512xf32> to vector<8x128xf32>
    %25 = math.tanh %24 : vector<8x128xf32>
    %26 = vector.extract_strided_slice %11 {offsets = [0, 384], sizes = [8, 128], strides = [1, 1]} : vector<8x512xf32> to vector<8x128xf32>
    %27 = arith.negf %26 : vector<8x128xf32>
    %28 = math.exp %27 : vector<8x128xf32>
    %cst_11 = arith.constant 1.000000e+00 : f32
    %29 = vector.broadcast %cst_11 : f32 to vector<8x128xf32>
    %30 = arith.addf %29, %28 : vector<8x128xf32>
    %31 = arith.divf %29, %30 : vector<8x128xf32>
    %32 = arith.mulf %23, %5 : vector<8x128xf32>
    %33 = arith.mulf %17, %25 : vector<8x128xf32>
    %34 = arith.addf %32, %33 : vector<8x128xf32>
    %35 = math.tanh %34 : vector<8x128xf32>
    %36 = arith.mulf %31, %35 : vector<8x128xf32>
    %37 = arith.index_cast %c0_i32_6 : i32 to index
    %c0_12 = arith.constant 0 : index
    %c0_13 = arith.constant 0 : index
    %38 = vector.load %arg4[%37, %c0_12, %c0_13] : memref<8x8x128xf32, #tpu.memory_space<vmem>>, vector<1x8x128xf32>
    %39 = vector.shape_cast %38 : vector<1x8x128xf32> to vector<8x128xf32>
    %40 = vector.shape_cast %36 : vector<8x128xf32> to vector<1x8x128xf32>
    tpu.vector_store %arg4[%37, %c0_12, %c0_13], %40 {strides = array<i32>} : memref<8x8x128xf32, #tpu.memory_space<vmem>>, vector<1x8x128xf32>,
    %c1_i32 = arith.constant 1 : i32
    %41 = arith.index_cast %c1_i32 : i32 to index
    %c0_14 = arith.constant 0 : index
    %c0_15 = arith.constant 0 : index
    %42 = vector.load %arg2[%41, %c0_14, %c0_15] : memref<8x8x512xf32, #tpu.memory_space<vmem>>, vector<1x8x512xf32>
    %43 = vector.shape_cast %42 : vector<1x8x512xf32> to vector<8x512xf32>
    %44 = arith.truncf %36 : vector<8x128xf32> to vector<8x128xbf16>
    %cst_16 = arith.constant dense<0.000000e+00> : vector<8x512xf32>
    %45 = tpu.matmul %44, %3, %cst_16 {dimension_numbers = #tpu.dot_dimension_numbers<[1], [0], [0], [1], [0, 0, 1, 1], [], []>} : vector<8x128xbf16>, vector<128x512xbf16>, vector<8x512xf32> -> vector<8x512xf32>
    %46 = arith.addf %43, %45 : vector<8x512xf32>
    %47 = vector.extract_strided_slice %46 {offsets = [0, 0], sizes = [8, 128], strides = [1, 1]} : vector<8x512xf32> to vector<8x128xf32>
    %48 = arith.negf %47 : vector<8x128xf32>
    %49 = math.exp %48 : vector<8x128xf32>
    %cst_17 = arith.constant 1.000000e+00 : f32
    %50 = vector.broadcast %cst_17 : f32 to vector<8x128xf32>
    %51 = arith.addf %50, %49 : vector<8x128xf32>
    %52 = arith.divf %50, %51 : vector<8x128xf32>
    %53 = vector.extract_strided_slice %46 {offsets = [0, 128], sizes = [8, 128], strides = [1, 1]} : vector<8x512xf32> to vector<8x128xf32>
    %54 = arith.negf %53 : vector<8x128xf32>
    %55 = math.exp %54 : vector<8x128xf32>
    %cst_18 = arith.constant 1.000000e+00 : f32
    %56 = vector.broadcast %cst_18 : f32 to vector<8x128xf32>
    %57 = arith.addf %56, %55 : vector<8x128xf32>
    %58 = arith.divf %56, %57 : vector<8x128xf32>
    %59 = vector.extract_strided_slice %46 {offsets = [0, 256], sizes = [8, 128], strides = [1, 1]} : vector<8x512xf32> to vector<8x128xf32>
    %60 = math.tanh %59 : vector<8x128xf32>
    %61 = vector.extract_strided_slice %46 {offsets = [0, 384], sizes = [8, 128], strides = [1, 1]} : vector<8x512xf32> to vector<8x128xf32>
    %62 = arith.negf %61 : vector<8x128xf32>
    %63 = math.exp %62 : vector<8x128xf32>
    %cst_19 = arith.constant 1.000000e+00 : f32
    %64 = vector.broadcast %cst_19 : f32 to vector<8x128xf32>
    %65 = arith.addf %64, %63 : vector<8x128xf32>
    %66 = arith.divf %64, %65 : vector<8x128xf32>
    %67 = arith.mulf %58, %34 : vector<8x128xf32>
    %68 = arith.mulf %52, %60 : vector<8x128xf32>
    %69 = arith.addf %67, %68 : vector<8x128xf32>
    %70 = math.tanh %69 : vector<8x128xf32>
    %71 = arith.mulf %66, %70 : vector<8x128xf32>
    %72 = arith.index_cast %c1_i32 : i32 to index
    %c0_20 = arith.constant 0 : index
    %c0_21 = arith.constant 0 : index
    %73 = vector.load %arg4[%72, %c0_20, %c0_21] : memref<8x8x128xf32, #tpu.memory_space<vmem>>, vector<1x8x128xf32>
    %74 = vector.shape_cast %73 : vector<1x8x128xf32> to vector<8x128xf32>
    %75 = vector.shape_cast %71 : vector<8x128xf32> to vector<1x8x128xf32>
    tpu.vector_store %arg4[%72, %c0_20, %c0_21], %75 {strides = array<i32>} : memref<8x8x128xf32, #tpu.memory_space<vmem>>, vector<1x8x128xf32>,
    %c2_i32 = arith.constant 2 : i32
    %76 = arith.index_cast %c2_i32 : i32 to index
    %c0_22 = arith.constant 0 : index
    %c0_23 = arith.constant 0 : index
    %77 = vector.load %arg2[%76, %c0_22, %c0_23] : memref<8x8x512xf32, #tpu.memory_space<vmem>>, vector<1x8x512xf32>
    %78 = vector.shape_cast %77 : vector<1x8x512xf32> to vector<8x512xf32>
    %79 = arith.truncf %71 : vector<8x128xf32> to vector<8x128xbf16>
    %cst_24 = arith.constant dense<0.000000e+00> : vector<8x512xf32>
    %80 = tpu.matmul %79, %3, %cst_24 {dimension_numbers = #tpu.dot_dimension_numbers<[1], [0], [0], [1], [0, 0, 1, 1], [], []>} : vector<8x128xbf16>, vector<128x512xbf16>, vector<8x512xf32> -> vector<8x512xf32>
    %81 = arith.addf %78, %80 : vector<8x512xf32>
    %82 = vector.extract_strided_slice %81 {offsets = [0, 0], sizes = [8, 128], strides = [1, 1]} : vector<8x512xf32> to vector<8x128xf32>
    %83 = arith.negf %82 : vector<8x128xf32>
    %84 = math.exp %83 : vector<8x128xf32>
    %cst_25 = arith.constant 1.000000e+00 : f32
    %85 = vector.broadcast %cst_25 : f32 to vector<8x128xf32>
    %86 = arith.addf %85, %84 : vector<8x128xf32>
    %87 = arith.divf %85, %86 : vector<8x128xf32>
    %88 = vector.extract_strided_slice %81 {offsets = [0, 128], sizes = [8, 128], strides = [1, 1]} : vector<8x512xf32> to vector<8x128xf32>
    %89 = arith.negf %88 : vector<8x128xf32>
    %90 = math.exp %89 : vector<8x128xf32>
    %cst_26 = arith.constant 1.000000e+00 : f32
    %91 = vector.broadcast %cst_26 : f32 to vector<8x128xf32>
    %92 = arith.addf %91, %90 : vector<8x128xf32>
    %93 = arith.divf %91, %92 : vector<8x128xf32>
    %94 = vector.extract_strided_slice %81 {offsets = [0, 256], sizes = [8, 128], strides = [1, 1]} : vector<8x512xf32> to vector<8x128xf32>
    %95 = math.tanh %94 : vector<8x128xf32>
    %96 = vector.extract_strided_slice %81 {offsets = [0, 384], sizes = [8, 128], strides = [1, 1]} : vector<8x512xf32> to vector<8x128xf32>
    %97 = arith.negf %96 : vector<8x128xf32>
    %98 = math.exp %97 : vector<8x128xf32>
    %cst_27 = arith.constant 1.000000e+00 : f32
    %99 = vector.broadcast %cst_27 : f32 to vector<8x128xf32>
    %100 = arith.addf %99, %98 : vector<8x128xf32>
    %101 = arith.divf %99, %100 : vector<8x128xf32>
    %102 = arith.mulf %93, %69 : vector<8x128xf32>
    %103 = arith.mulf %87, %95 : vector<8x128xf32>
    %104 = arith.addf %102, %103 : vector<8x128xf32>
    %105 = math.tanh %104 : vector<8x128xf32>
    %106 = arith.mulf %101, %105 : vector<8x128xf32>
    %107 = arith.index_cast %c2_i32 : i32 to index
    %c0_28 = arith.constant 0 : index
    %c0_29 = arith.constant 0 : index
    %108 = vector.load %arg4[%107, %c0_28, %c0_29] : memref<8x8x128xf32, #tpu.memory_space<vmem>>, vector<1x8x128xf32>
    %109 = vector.shape_cast %108 : vector<1x8x128xf32> to vector<8x128xf32>
    %110 = vector.shape_cast %106 : vector<8x128xf32> to vector<1x8x128xf32>
    tpu.vector_store %arg4[%107, %c0_28, %c0_29], %110 {strides = array<i32>} : memref<8x8x128xf32, #tpu.memory_space<vmem>>, vector<1x8x128xf32>,
    %c3_i32 = arith.constant 3 : i32
    %111 = arith.index_cast %c3_i32 : i32 to index
    %c0_30 = arith.constant 0 : index
    %c0_31 = arith.constant 0 : index
    %112 = vector.load %arg2[%111, %c0_30, %c0_31] : memref<8x8x512xf32, #tpu.memory_space<vmem>>, vector<1x8x512xf32>
    %113 = vector.shape_cast %112 : vector<1x8x512xf32> to vector<8x512xf32>
    %114 = arith.truncf %106 : vector<8x128xf32> to vector<8x128xbf16>
    %cst_32 = arith.constant dense<0.000000e+00> : vector<8x512xf32>
    %115 = tpu.matmul %114, %3, %cst_32 {dimension_numbers = #tpu.dot_dimension_numbers<[1], [0], [0], [1], [0, 0, 1, 1], [], []>} : vector<8x128xbf16>, vector<128x512xbf16>, vector<8x512xf32> -> vector<8x512xf32>
    %116 = arith.addf %113, %115 : vector<8x512xf32>
    %117 = vector.extract_strided_slice %116 {offsets = [0, 0], sizes = [8, 128], strides = [1, 1]} : vector<8x512xf32> to vector<8x128xf32>
    %118 = arith.negf %117 : vector<8x128xf32>
    %119 = math.exp %118 : vector<8x128xf32>
    %cst_33 = arith.constant 1.000000e+00 : f32
    %120 = vector.broadcast %cst_33 : f32 to vector<8x128xf32>
    %121 = arith.addf %120, %119 : vector<8x128xf32>
    %122 = arith.divf %120, %121 : vector<8x128xf32>
    %123 = vector.extract_strided_slice %116 {offsets = [0, 128], sizes = [8, 128], strides = [1, 1]} : vector<8x512xf32> to vector<8x128xf32>
    %124 = arith.negf %123 : vector<8x128xf32>
    %125 = math.exp %124 : vector<8x128xf32>
    %cst_34 = arith.constant 1.000000e+00 : f32
    %126 = vector.broadcast %cst_34 : f32 to vector<8x128xf32>
    %127 = arith.addf %126, %125 : vector<8x128xf32>
    %128 = arith.divf %126, %127 : vector<8x128xf32>
    %129 = vector.extract_strided_slice %116 {offsets = [0, 256], sizes = [8, 128], strides = [1, 1]} : vector<8x512xf32> to vector<8x128xf32>
    %130 = math.tanh %129 : vector<8x128xf32>
    %131 = vector.extract_strided_slice %116 {offsets = [0, 384], sizes = [8, 128], strides = [1, 1]} : vector<8x512xf32> to vector<8x128xf32>
    %132 = arith.negf %131 : vector<8x128xf32>
    %133 = math.exp %132 : vector<8x128xf32>
    %cst_35 = arith.constant 1.000000e+00 : f32
    %134 = vector.broadcast %cst_35 : f32 to vector<8x128xf32>
    %135 = arith.addf %134, %133 : vector<8x128xf32>
    %136 = arith.divf %134, %135 : vector<8x128xf32>
    %137 = arith.mulf %128, %104 : vector<8x128xf32>
    %138 = arith.mulf %122, %130 : vector<8x128xf32>
    %139 = arith.addf %137, %138 : vector<8x128xf32>
    %140 = math.tanh %139 : vector<8x128xf32>
    %141 = arith.mulf %136, %140 : vector<8x128xf32>
    %142 = arith.index_cast %c3_i32 : i32 to index
    %c0_36 = arith.constant 0 : index
    %c0_37 = arith.constant 0 : index
    %143 = vector.load %arg4[%142, %c0_36, %c0_37] : memref<8x8x128xf32, #tpu.memory_space<vmem>>, vector<1x8x128xf32>
    %144 = vector.shape_cast %143 : vector<1x8x128xf32> to vector<8x128xf32>
    %145 = vector.shape_cast %141 : vector<8x128xf32> to vector<1x8x128xf32>
    tpu.vector_store %arg4[%142, %c0_36, %c0_37], %145 {strides = array<i32>} : memref<8x8x128xf32, #tpu.memory_space<vmem>>, vector<1x8x128xf32>,
    %c4_i32 = arith.constant 4 : i32
    %146 = arith.index_cast %c4_i32 : i32 to index
    %c0_38 = arith.constant 0 : index
    %c0_39 = arith.constant 0 : index
    %147 = vector.load %arg2[%146, %c0_38, %c0_39] : memref<8x8x512xf32, #tpu.memory_space<vmem>>, vector<1x8x512xf32>
    %148 = vector.shape_cast %147 : vector<1x8x512xf32> to vector<8x512xf32>
    %149 = arith.truncf %141 : vector<8x128xf32> to vector<8x128xbf16>
    %cst_40 = arith.constant dense<0.000000e+00> : vector<8x512xf32>
    %150 = tpu.matmul %149, %3, %cst_40 {dimension_numbers = #tpu.dot_dimension_numbers<[1], [0], [0], [1], [0, 0, 1, 1], [], []>} : vector<8x128xbf16>, vector<128x512xbf16>, vector<8x512xf32> -> vector<8x512xf32>
    %151 = arith.addf %148, %150 : vector<8x512xf32>
    %152 = vector.extract_strided_slice %151 {offsets = [0, 0], sizes = [8, 128], strides = [1, 1]} : vector<8x512xf32> to vector<8x128xf32>
    %153 = arith.negf %152 : vector<8x128xf32>
    %154 = math.exp %153 : vector<8x128xf32>
    %cst_41 = arith.constant 1.000000e+00 : f32
    %155 = vector.broadcast %cst_41 : f32 to vector<8x128xf32>
    %156 = arith.addf %155, %154 : vector<8x128xf32>
    %157 = arith.divf %155, %156 : vector<8x128xf32>
    %158 = vector.extract_strided_slice %151 {offsets = [0, 128], sizes = [8, 128], strides = [1, 1]} : vector<8x512xf32> to vector<8x128xf32>
    %159 = arith.negf %158 : vector<8x128xf32>
    %160 = math.exp %159 : vector<8x128xf32>
    %cst_42 = arith.constant 1.000000e+00 : f32
    %161 = vector.broadcast %cst_42 : f32 to vector<8x128xf32>
    %162 = arith.addf %161, %160 : vector<8x128xf32>
    %163 = arith.divf %161, %162 : vector<8x128xf32>
    %164 = vector.extract_strided_slice %151 {offsets = [0, 256], sizes = [8, 128], strides = [1, 1]} : vector<8x512xf32> to vector<8x128xf32>
    %165 = math.tanh %164 : vector<8x128xf32>
    %166 = vector.extract_strided_slice %151 {offsets = [0, 384], sizes = [8, 128], strides = [1, 1]} : vector<8x512xf32> to vector<8x128xf32>
    %167 = arith.negf %166 : vector<8x128xf32>
    %168 = math.exp %167 : vector<8x128xf32>
    %cst_43 = arith.constant 1.000000e+00 : f32
    %169 = vector.broadcast %cst_43 : f32 to vector<8x128xf32>
    %170 = arith.addf %169, %168 : vector<8x128xf32>
    %171 = arith.divf %169, %170 : vector<8x128xf32>
    %172 = arith.mulf %163, %139 : vector<8x128xf32>
    %173 = arith.mulf %157, %165 : vector<8x128xf32>
    %174 = arith.addf %172, %173 : vector<8x128xf32>
    %175 = math.tanh %174 : vector<8x128xf32>
    %176 = arith.mulf %171, %175 : vector<8x128xf32>
    %177 = arith.index_cast %c4_i32 : i32 to index
    %c0_44 = arith.constant 0 : index
    %c0_45 = arith.constant 0 : index
    %178 = vector.load %arg4[%177, %c0_44, %c0_45] : memref<8x8x128xf32, #tpu.memory_space<vmem>>, vector<1x8x128xf32>
    %179 = vector.shape_cast %178 : vector<1x8x128xf32> to vector<8x128xf32>
    %180 = vector.shape_cast %176 : vector<8x128xf32> to vector<1x8x128xf32>
    tpu.vector_store %arg4[%177, %c0_44, %c0_45], %180 {strides = array<i32>} : memref<8x8x128xf32, #tpu.memory_space<vmem>>, vector<1x8x128xf32>,
    %c5_i32 = arith.constant 5 : i32
    %181 = arith.index_cast %c5_i32 : i32 to index
    %c0_46 = arith.constant 0 : index
    %c0_47 = arith.constant 0 : index
    %182 = vector.load %arg2[%181, %c0_46, %c0_47] : memref<8x8x512xf32, #tpu.memory_space<vmem>>, vector<1x8x512xf32>
    %183 = vector.shape_cast %182 : vector<1x8x512xf32> to vector<8x512xf32>
    %184 = arith.truncf %176 : vector<8x128xf32> to vector<8x128xbf16>
    %cst_48 = arith.constant dense<0.000000e+00> : vector<8x512xf32>
    %185 = tpu.matmul %184, %3, %cst_48 {dimension_numbers = #tpu.dot_dimension_numbers<[1], [0], [0], [1], [0, 0, 1, 1], [], []>} : vector<8x128xbf16>, vector<128x512xbf16>, vector<8x512xf32> -> vector<8x512xf32>
    %186 = arith.addf %183, %185 : vector<8x512xf32>
    %187 = vector.extract_strided_slice %186 {offsets = [0, 0], sizes = [8, 128], strides = [1, 1]} : vector<8x512xf32> to vector<8x128xf32>
    %188 = arith.negf %187 : vector<8x128xf32>
    %189 = math.exp %188 : vector<8x128xf32>
    %cst_49 = arith.constant 1.000000e+00 : f32
    %190 = vector.broadcast %cst_49 : f32 to vector<8x128xf32>
    %191 = arith.addf %190, %189 : vector<8x128xf32>
    %192 = arith.divf %190, %191 : vector<8x128xf32>
    %193 = vector.extract_strided_slice %186 {offsets = [0, 128], sizes = [8, 128], strides = [1, 1]} : vector<8x512xf32> to vector<8x128xf32>
    %194 = arith.negf %193 : vector<8x128xf32>
    %195 = math.exp %194 : vector<8x128xf32>
    %cst_50 = arith.constant 1.000000e+00 : f32
    %196 = vector.broadcast %cst_50 : f32 to vector<8x128xf32>
    %197 = arith.addf %196, %195 : vector<8x128xf32>
    %198 = arith.divf %196, %197 : vector<8x128xf32>
    %199 = vector.extract_strided_slice %186 {offsets = [0, 256], sizes = [8, 128], strides = [1, 1]} : vector<8x512xf32> to vector<8x128xf32>
    %200 = math.tanh %199 : vector<8x128xf32>
    %201 = vector.extract_strided_slice %186 {offsets = [0, 384], sizes = [8, 128], strides = [1, 1]} : vector<8x512xf32> to vector<8x128xf32>
    %202 = arith.negf %201 : vector<8x128xf32>
    %203 = math.exp %202 : vector<8x128xf32>
    %cst_51 = arith.constant 1.000000e+00 : f32
    %204 = vector.broadcast %cst_51 : f32 to vector<8x128xf32>
    %205 = arith.addf %204, %203 : vector<8x128xf32>
    %206 = arith.divf %204, %205 : vector<8x128xf32>
    %207 = arith.mulf %198, %174 : vector<8x128xf32>
    %208 = arith.mulf %192, %200 : vector<8x128xf32>
    %209 = arith.addf %207, %208 : vector<8x128xf32>
    %210 = math.tanh %209 : vector<8x128xf32>
    %211 = arith.mulf %206, %210 : vector<8x128xf32>
    %212 = arith.index_cast %c5_i32 : i32 to index
    %c0_52 = arith.constant 0 : index
    %c0_53 = arith.constant 0 : index
    %213 = vector.load %arg4[%212, %c0_52, %c0_53] : memref<8x8x128xf32, #tpu.memory_space<vmem>>, vector<1x8x128xf32>
    %214 = vector.shape_cast %213 : vector<1x8x128xf32> to vector<8x128xf32>
    %215 = vector.shape_cast %211 : vector<8x128xf32> to vector<1x8x128xf32>
    tpu.vector_store %arg4[%212, %c0_52, %c0_53], %215 {strides = array<i32>} : memref<8x8x128xf32, #tpu.memory_space<vmem>>, vector<1x8x128xf32>,
    %c6_i32 = arith.constant 6 : i32
    %216 = arith.index_cast %c6_i32 : i32 to index
    %c0_54 = arith.constant 0 : index
    %c0_55 = arith.constant 0 : index
    %217 = vector.load %arg2[%216, %c0_54, %c0_55] : memref<8x8x512xf32, #tpu.memory_space<vmem>>, vector<1x8x512xf32>
    %218 = vector.shape_cast %217 : vector<1x8x512xf32> to vector<8x512xf32>
    %219 = arith.truncf %211 : vector<8x128xf32> to vector<8x128xbf16>
    %cst_56 = arith.constant dense<0.000000e+00> : vector<8x512xf32>
    %220 = tpu.matmul %219, %3, %cst_56 {dimension_numbers = #tpu.dot_dimension_numbers<[1], [0], [0], [1], [0, 0, 1, 1], [], []>} : vector<8x128xbf16>, vector<128x512xbf16>, vector<8x512xf32> -> vector<8x512xf32>
    %221 = arith.addf %218, %220 : vector<8x512xf32>
    %222 = vector.extract_strided_slice %221 {offsets = [0, 0], sizes = [8, 128], strides = [1, 1]} : vector<8x512xf32> to vector<8x128xf32>
    %223 = arith.negf %222 : vector<8x128xf32>
    %224 = math.exp %223 : vector<8x128xf32>
    %cst_57 = arith.constant 1.000000e+00 : f32
    %225 = vector.broadcast %cst_57 : f32 to vector<8x128xf32>
    %226 = arith.addf %225, %224 : vector<8x128xf32>
    %227 = arith.divf %225, %226 : vector<8x128xf32>
    %228 = vector.extract_strided_slice %221 {offsets = [0, 128], sizes = [8, 128], strides = [1, 1]} : vector<8x512xf32> to vector<8x128xf32>
    %229 = arith.negf %228 : vector<8x128xf32>
    %230 = math.exp %229 : vector<8x128xf32>
    %cst_58 = arith.constant 1.000000e+00 : f32
    %231 = vector.broadcast %cst_58 : f32 to vector<8x128xf32>
    %232 = arith.addf %231, %230 : vector<8x128xf32>
    %233 = arith.divf %231, %232 : vector<8x128xf32>
    %234 = vector.extract_strided_slice %221 {offsets = [0, 256], sizes = [8, 128], strides = [1, 1]} : vector<8x512xf32> to vector<8x128xf32>
    %235 = math.tanh %234 : vector<8x128xf32>
    %236 = vector.extract_strided_slice %221 {offsets = [0, 384], sizes = [8, 128], strides = [1, 1]} : vector<8x512xf32> to vector<8x128xf32>
    %237 = arith.negf %236 : vector<8x128xf32>
    %238 = math.exp %237 : vector<8x128xf32>
    %cst_59 = arith.constant 1.000000e+00 : f32
    %239 = vector.broadcast %cst_59 : f32 to vector<8x128xf32>
    %240 = arith.addf %239, %238 : vector<8x128xf32>
    %241 = arith.divf %239, %240 : vector<8x128xf32>
    %242 = arith.mulf %233, %209 : vector<8x128xf32>
    %243 = arith.mulf %227, %235 : vector<8x128xf32>
    %244 = arith.addf %242, %243 : vector<8x128xf32>
    %245 = math.tanh %244 : vector<8x128xf32>
    %246 = arith.mulf %241, %245 : vector<8x128xf32>
    %247 = arith.index_cast %c6_i32 : i32 to index
    %c0_60 = arith.constant 0 : index
    %c0_61 = arith.constant 0 : index
    %248 = vector.load %arg4[%247, %c0_60, %c0_61] : memref<8x8x128xf32, #tpu.memory_space<vmem>>, vector<1x8x128xf32>
    %249 = vector.shape_cast %248 : vector<1x8x128xf32> to vector<8x128xf32>
    %250 = vector.shape_cast %246 : vector<8x128xf32> to vector<1x8x128xf32>
    tpu.vector_store %arg4[%247, %c0_60, %c0_61], %250 {strides = array<i32>} : memref<8x8x128xf32, #tpu.memory_space<vmem>>, vector<1x8x128xf32>,
    %c7_i32 = arith.constant 7 : i32
    %251 = arith.index_cast %c7_i32 : i32 to index
    %c0_62 = arith.constant 0 : index
    %c0_63 = arith.constant 0 : index
    %252 = vector.load %arg2[%251, %c0_62, %c0_63] : memref<8x8x512xf32, #tpu.memory_space<vmem>>, vector<1x8x512xf32>
    %253 = vector.shape_cast %252 : vector<1x8x512xf32> to vector<8x512xf32>
    %254 = arith.truncf %246 : vector<8x128xf32> to vector<8x128xbf16>
    %cst_64 = arith.constant dense<0.000000e+00> : vector<8x512xf32>
    %255 = tpu.matmul %254, %3, %cst_64 {dimension_numbers = #tpu.dot_dimension_numbers<[1], [0], [0], [1], [0, 0, 1, 1], [], []>} : vector<8x128xbf16>, vector<128x512xbf16>, vector<8x512xf32> -> vector<8x512xf32>
    %256 = arith.addf %253, %255 : vector<8x512xf32>
    %257 = vector.extract_strided_slice %256 {offsets = [0, 0], sizes = [8, 128], strides = [1, 1]} : vector<8x512xf32> to vector<8x128xf32>
    %258 = arith.negf %257 : vector<8x128xf32>
    %259 = math.exp %258 : vector<8x128xf32>
    %cst_65 = arith.constant 1.000000e+00 : f32
    %260 = vector.broadcast %cst_65 : f32 to vector<8x128xf32>
    %261 = arith.addf %260, %259 : vector<8x128xf32>
    %262 = arith.divf %260, %261 : vector<8x128xf32>
    %263 = vector.extract_strided_slice %256 {offsets = [0, 128], sizes = [8, 128], strides = [1, 1]} : vector<8x512xf32> to vector<8x128xf32>
    %264 = arith.negf %263 : vector<8x128xf32>
    %265 = math.exp %264 : vector<8x128xf32>
    %cst_66 = arith.constant 1.000000e+00 : f32
    %266 = vector.broadcast %cst_66 : f32 to vector<8x128xf32>
    %267 = arith.addf %266, %265 : vector<8x128xf32>
    %268 = arith.divf %266, %267 : vector<8x128xf32>
    %269 = vector.extract_strided_slice %256 {offsets = [0, 256], sizes = [8, 128], strides = [1, 1]} : vector<8x512xf32> to vector<8x128xf32>
    %270 = math.tanh %269 : vector<8x128xf32>
    %271 = vector.extract_strided_slice %256 {offsets = [0, 384], sizes = [8, 128], strides = [1, 1]} : vector<8x512xf32> to vector<8x128xf32>
    %272 = arith.negf %271 : vector<8x128xf32>
    %273 = math.exp %272 : vector<8x128xf32>
    %cst_67 = arith.constant 1.000000e+00 : f32
    %274 = vector.broadcast %cst_67 : f32 to vector<8x128xf32>
    %275 = arith.addf %274, %273 : vector<8x128xf32>
    %276 = arith.divf %274, %275 : vector<8x128xf32>
    %277 = arith.mulf %268, %244 : vector<8x128xf32>
    %278 = arith.mulf %262, %270 : vector<8x128xf32>
    %279 = arith.addf %277, %278 : vector<8x128xf32>
    %280 = math.tanh %279 : vector<8x128xf32>
    %281 = arith.mulf %276, %280 : vector<8x128xf32>
    %282 = arith.index_cast %c7_i32 : i32 to index
    %c0_68 = arith.constant 0 : index
    %c0_69 = arith.constant 0 : index
    %283 = vector.load %arg4[%282, %c0_68, %c0_69] : memref<8x8x128xf32, #tpu.memory_space<vmem>>, vector<1x8x128xf32>
    %284 = vector.shape_cast %283 : vector<1x8x128xf32> to vector<8x128xf32>
    %285 = vector.shape_cast %281 : vector<8x128xf32> to vector<1x8x128xf32>
    tpu.vector_store %arg4[%282, %c0_68, %c0_69], %285 {strides = array<i32>} : memref<8x8x128xf32, #tpu.memory_space<vmem>>, vector<1x8x128xf32>,
    %c8_i32 = arith.constant 8 : i32
    %c0_70 = arith.constant 0 : index
    %c0_71 = arith.constant 0 : index
    %286 = vector.load %arg5[%c0_70, %c0_71] : memref<8x128xf32, #tpu.memory_space<vmem>>, vector<8x128xf32>
    tpu.vector_store %arg5[%c0_70, %c0_71], %281 {strides = array<i32>} : memref<8x128xf32, #tpu.memory_space<vmem>>, vector<8x128xf32>,
    %c0_72 = arith.constant 0 : index
    %c0_73 = arith.constant 0 : index
    %287 = vector.load %arg6[%c0_72, %c0_73] : memref<8x128xf32, #tpu.memory_space<vmem>>, vector<8x128xf32>
    tpu.vector_store %arg6[%c0_72, %c0_73], %279 {strides = array<i32>} : memref<8x128xf32, #tpu.memory_space<vmem>>, vector<8x128xf32>,
    return
  }
  func.func @transform_0(%arg0: i32, %arg1: i32) -> (i32, i32, i32) {
    %c0_i32 = arith.constant 0 : i32
    %c0_i32_0 = arith.constant 0 : i32
    return %arg1, %arg0, %c0_i32 : i32, i32, i32
  }
  func.func @transform_1(%arg0: i32, %arg1: i32) -> (i32, i32) {
    %c0_i32 = arith.constant 0 : i32
    %c0_i32_0 = arith.constant 0 : i32
    %c0_i32_1 = arith.constant 0 : i32
    return %c0_i32, %c0_i32_0 : i32, i32
  }
  func.func @transform_2(%arg0: i32, %arg1: i32) -> (i32, i32, i32) {
    %c0_i32 = arith.constant 0 : i32
    %c0_i32_0 = arith.constant 0 : i32
    return %arg1, %arg0, %c0_i32 : i32, i32, i32
  }
}

module attributes {stable_mosaic.version = 11 : i64} {
  func.func @_matmul_bias_kernel(%arg0: i32, %arg1: memref<64x128xbf16, #tpu.memory_space<vmem>>, %arg2: memref<128x128xbf16, #tpu.memory_space<vmem>>, %arg3: memref<1x128xf32, #tpu.memory_space<vmem>>, %arg4: memref<64x128xf32, #tpu.memory_space<vmem>>) attributes {dimension_semantics = [#tpu.dimension_semantics<parallel>], iteration_bounds = array<i64: 1>, scalar_prefetch = 0 : i64, scratch_operands = 0 : i64, tpu.core_type = #tpu.core_type<tc>, window_params = [{transform_indices = @transform_0, window_bounds = array<i64: 64, 128>}, {pipeline_mode = #tpu.pipeline_mode<synchronous>, transform_indices = @transform_1, window_bounds = array<i64: 128, 128>}, {pipeline_mode = #tpu.pipeline_mode<synchronous>, transform_indices = @transform_2, window_bounds = array<i64: 1, 128>}, {transform_indices = @transform_3, window_bounds = array<i64: 64, 128>}]} {
    %c0 = arith.constant 0 : index
    %c0_0 = arith.constant 0 : index
    %0 = vector.load %arg1[%c0, %c0_0] : memref<64x128xbf16, #tpu.memory_space<vmem>>, vector<64x128xbf16>
    %c0_1 = arith.constant 0 : index
    %c0_2 = arith.constant 0 : index
    %1 = vector.load %arg2[%c0_1, %c0_2] : memref<128x128xbf16, #tpu.memory_space<vmem>>, vector<128x128xbf16>
    %cst = arith.constant dense<0.000000e+00> : vector<64x128xf32>
    %2 = tpu.matmul %0, %1, %cst {dimension_numbers = #tpu.dot_dimension_numbers<[1], [0], [0], [1], [0, 0, 1, 1], [], []>} : vector<64x128xbf16>, vector<128x128xbf16>, vector<64x128xf32> -> vector<64x128xf32>
    %c0_3 = arith.constant 0 : index
    %c0_4 = arith.constant 0 : index
    %3 = vector.load %arg3[%c0_3, %c0_4] : memref<1x128xf32, #tpu.memory_space<vmem>>, vector<1x128xf32>
    %4 = vector.broadcast %3 : vector<1x128xf32> to vector<64x128xf32>
    %5 = arith.addf %2, %4 : vector<64x128xf32>
    %c0_5 = arith.constant 0 : index
    %c0_6 = arith.constant 0 : index
    %6 = vector.load %arg4[%c0_5, %c0_6] : memref<64x128xf32, #tpu.memory_space<vmem>>, vector<64x128xf32>
    tpu.vector_store %arg4[%c0_5, %c0_6], %5 {strides = array<i32>} : memref<64x128xf32, #tpu.memory_space<vmem>>, vector<64x128xf32>,
    return
  }
  func.func @transform_0(%arg0: i32) -> (i32, i32) {
    %c0_i32 = arith.constant 0 : i32
    %c0_i32_0 = arith.constant 0 : i32
    return %arg0, %c0_i32 : i32, i32
  }
  func.func @transform_1(%arg0: i32) -> (i32, i32) {
    %c0_i32 = arith.constant 0 : i32
    %c0_i32_0 = arith.constant 0 : i32
    %c0_i32_1 = arith.constant 0 : i32
    return %c0_i32, %c0_i32_0 : i32, i32
  }
  func.func @transform_2(%arg0: i32) -> (i32, i32) {
    %c0_i32 = arith.constant 0 : i32
    %c0_i32_0 = arith.constant 0 : i32
    %c0_i32_1 = arith.constant 0 : i32
    return %c0_i32, %c0_i32_0 : i32, i32
  }
  func.func @transform_3(%arg0: i32) -> (i32, i32) {
    %c0_i32 = arith.constant 0 : i32
    %c0_i32_0 = arith.constant 0 : i32
    return %arg0, %c0_i32 : i32, i32
  }
}

</mosaic_0001>

<llo_original>
// kernel: decoder_rnn_forward.5
$region0: #{decoder_rnn_forward.5}
  #allocation0 [shape = 'u32[]', space=smem, size = 0x4, offset = 0x4, fixed_abs, tag = 'smem constant byte address 0x4 - core index']
  #allocation1 [shape = 'u32[72,128]{1,0:T(1,128)}', space=vmem, size = 0x9000, scoped, tag = 'internal scratch']
  %s0 = inlined_call_operand.vmem [shape: bf16[64,128], index: 0, kind: input, shape index: {}]
  %s1 = inlined_call_operand.vmem [shape: bf16[128,128], index: 1, kind: input, shape index: {}]
  %s2 = inlined_call_operand.vmem [shape: f32[1,128], index: 2, kind: input, shape index: {}]
  %s3 = inlined_call_operand.vmem [shape: f32[64,128], index: 3, kind: output, shape index: {}]
  %s4 = sld [smem:[#allocation0]]
  $region22: #{decoder_rnn_forward.5} parent=0
    _
  %s6 = ssub.s32 1, %s4
  %s7 = scalar_select 0, %s6, %s4
  // Predicated region
  $region2: #{decoder_rnn_forward.5} parent=0 // pred_check
    _
  $region3: #{decoder_rnn_forward.5} parent=0 // pred_check_branch
    %9 = sbr.rel (0) target = $region5
  $region4: #{decoder_rnn_forward.5} parent=0 // pred_region
    _
  $region5: #{decoder_rnn_forward.5} parent=0 // pred_fallthru
    _
  // Predicated region
  $region6: #{decoder_rnn_forward.5} parent=0 // pred_check
    _
  $region7: #{decoder_rnn_forward.5} parent=0 // pred_check_branch
    %11 = sbr.rel (0) target = $region9
  $region8: #{decoder_rnn_forward.5} parent=0 // pred_region
    _
  $region9: #{decoder_rnn_forward.5} parent=0 // pred_fallthru
    _
  // Predicated region
  $region10: #{decoder_rnn_forward.5} parent=0 // pred_check
    _
  $region11: #{decoder_rnn_forward.5} parent=0 // pred_check_branch
    %13 = sbr.rel (0) target = $region13
  $region12: #{decoder_rnn_forward.5} parent=0 // pred_region
    _
  $region13: #{decoder_rnn_forward.5} parent=0 // pred_fallthru
    _
  %v14 = vld [vmem:[%s0] sm:$0xf]
  %v15 = vld [vmem:[%s0 + $0x4] sm:$0xf]
  %v16 = vld [vmem:[%s0 + $0x8] sm:$0xf]
  %v17 = vld [vmem:[%s0 + $0xc] sm:$0xf]
  %v18 = vld [vmem:[%s0 + $0x10] sm:$0xf]
  %v19 = vld [vmem:[%s0 + $0x14] sm:$0xf]
  %v20 = vld [vmem:[%s0 + $0x18] sm:$0xf]
  %v21 = vld [vmem:[%s0 + $0x1c] sm:$0xf]
  %v22 = vld [vmem:[%s1] sm:$0xf]
  %v23 = vld [vmem:[%s1 + $0x4] sm:$0xf]
  %v24 = vld [vmem:[%s1 + $0x8] sm:$0xf]
  %v25 = vld [vmem:[%s1 + $0xc] sm:$0xf]
  %v26 = vld [vmem:[%s1 + $0x10] sm:$0xf]
  %v27 = vld [vmem:[%s1 + $0x14] sm:$0xf]
  %v28 = vld [vmem:[%s1 + $0x18] sm:$0xf]
  %v29 = vld [vmem:[%s1 + $0x1c] sm:$0xf]
  %v30 = vld [vmem:[%s1 + $0x20] sm:$0xf]
  %v31 = vld [vmem:[%s1 + $0x24] sm:$0xf]
  %v32 = vld [vmem:[%s1 + $0x28] sm:$0xf]
  %v33 = vld [vmem:[%s1 + $0x2c] sm:$0xf]
  %v34 = vld [vmem:[%s1 + $0x30] sm:$0xf]
  %v35 = vld [vmem:[%s1 + $0x34] sm:$0xf]
  %v36 = vld [vmem:[%s1 + $0x38] sm:$0xf]
  %v37 = vld [vmem:[%s1 + $0x3c] sm:$0xf]
  %v38 = vld [vmem:[%s2] sm:$0x1]
  %v40 = vperm.slane %v38, 0
  %v50 = vunpack.c.l.b16 %v14
  %v51 = vunpack.c.l.b16 %v15
  %v52 = vunpack.c.l.b16 %v16
  %v53 = vunpack.c.l.b16 %v17
  %v54 = vunpack.c.l.b16 %v18
  %v55 = vunpack.c.l.b16 %v19
  %v56 = vunpack.c.l.b16 %v20
  %v57 = vunpack.c.l.b16 %v21
  %v58 = vpack.c.b16 %v51, %v50
  %v59 = vpack.c.b16 %v53, %v52
  %v60 = vpack.c.b16 %v55, %v54
  %v61 = vpack.c.b16 %v57, %v56
  %v82 = vunpack.c.l.b16 %v22
  %v83 = vunpack.c.l.b16 %v23
  %v84 = vunpack.c.l.b16 %v24
  %v85 = vunpack.c.l.b16 %v25
  %v86 = vunpack.c.l.b16 %v26
  %v87 = vunpack.c.l.b16 %v27
  %v88 = vunpack.c.l.b16 %v28
  %v89 = vunpack.c.l.b16 %v29
  %v90 = vunpack.c.l.b16 %v30
  %v91 = vunpack.c.l.b16 %v31
  %v92 = vunpack.c.l.b16 %v32
  %v93 = vunpack.c.l.b16 %v33
  %v94 = vunpack.c.l.b16 %v34
  %v95 = vunpack.c.l.b16 %v35
  %v96 = vunpack.c.l.b16 %v36
  %v97 = vunpack.c.l.b16 %v37
  %v98 = vpack.c.b16 %v83, %v82
  %v99 = vpack.c.b16 %v85, %v84
  %v100 = vpack.c.b16 %v87, %v86
  %v101 = vpack.c.b16 %v89, %v88
  %v102 = vpack.c.b16 %v91, %v90
  %v103 = vpack.c.b16 %v93, %v92
  %v104 = vpack.c.b16 %v95, %v94
  %v105 = vpack.c.b16 %v97, %v96
  %114 = vmatpush.bf16.msra.mxu0 %v105
  %115 = vmatpush.bf16.msra.mxu0 %v104
  %116 = vmatpush.bf16.msra.mxu0 %v103
  %117 = vmatpush.bf16.msra.mxu0 %v102
  %118 = vmatpush.bf16.msra.mxu0 %v101
  %119 = vmatpush.bf16.msra.mxu0 %v100
  %120 = vmatpush.bf16.msra.mxu0 %v99
  %121 = vmatpush.bf16.msra.mxu0 %v98
  %122 = vmatmul.bf16.gmra.mxu0 %v58
  %v123 = vpop.f32.mrf.mxu0
  %v124 = vadd.f32 %v40, %v123
  %v125 = vpop.f32.mrf.mxu0
  %v126 = vadd.f32 %v40, %v125
  %127 = vmatmul.bf16.gmra.mxu0 %v59
  %v128 = vpop.f32.mrf.mxu0
  %v129 = vadd.f32 %v40, %v128
  %v130 = vpop.f32.mrf.mxu0
  %v131 = vadd.f32 %v40, %v130
  %132 = vmatmul.bf16.gmra.mxu0 %v60
  %v133 = vpop.f32.mrf.mxu0
  %v134 = vadd.f32 %v40, %v133
  %v135 = vpop.f32.mrf.mxu0
  %v136 = vadd.f32 %v40, %v135
  %137 = vmatmul.bf16.gmra.mxu0 %v61
  %v138 = vpop.f32.mrf.mxu0
  %v139 = vadd.f32 %v40, %v138
  %v140 = vpop.f32.mrf.mxu0
  %v141 = vadd.f32 %v40, %v140
  %142 = vdwg.mxu0
  %143 = vst [vmem:[%s3] sm:$0xff] %v124
  %144 = vst [vmem:[%s3 + $0x8] sm:$0xff] %v126
  %145 = vst [vmem:[%s3 + $0x10] sm:$0xff] %v129
  %146 = vst [vmem:[%s3 + $0x18] sm:$0xff] %v131
  %147 = vst [vmem:[%s3 + $0x20] sm:$0xff] %v134
  %148 = vst [vmem:[%s3 + $0x28] sm:$0xff] %v136
  %149 = vst [vmem:[%s3 + $0x30] sm:$0xff] %v139
  %150 = vst [vmem:[%s3 + $0x38] sm:$0xff] %v141
  // Predicated region
  $region14: #{decoder_rnn_forward.5} parent=0 // pred_check
    _
  $region15: #{decoder_rnn_forward.5} parent=0 // pred_check_branch
    %152 = sbr.rel (0) target = $region17
  $region16: #{decoder_rnn_forward.5} parent=0 // pred_region
    _
  $region17: #{decoder_rnn_forward.5} parent=0 // pred_fallthru
    _
  // Predicated region
  $region18: #{decoder_rnn_forward.5} parent=0 // pred_check
    _
  $region19: #{decoder_rnn_forward.5} parent=0 // pred_check_branch
    %154 = sbr.rel (0) target = $region21
  $region20: #{decoder_rnn_forward.5} parent=0 // pred_region
    _
  $region21: #{decoder_rnn_forward.5} parent=0 // pred_fallthru
    _

// kernel: decoder_rnn_forward.3
$region0: #{decoder_rnn_forward.3}
  #allocation0 [shape = 'u32[]', space=smem, size = 0x4, offset = 0x4, fixed_abs, tag = 'smem constant byte address 0x4 - core index']
  #allocation1 [shape = 'u32[72,128]{1,0:T(1,128)}', space=vmem, size = 0x9000, scoped, tag = 'internal scratch']
  %s0 = inlined_call_operand.vmem [shape: bf16[64,128], index: 0, kind: input, shape index: {}]
  %s1 = inlined_call_operand.vmem [shape: bf16[128,512], index: 1, kind: input, shape index: {}]
  %s2 = inlined_call_operand.vmem [shape: f32[1,512], index: 2, kind: input, shape index: {}]
  %s3 = inlined_call_operand.vmem [shape: f32[64,512], index: 3, kind: output, shape index: {}]
  %s4 = sld [smem:[#allocation0]]
  $region22: #{decoder_rnn_forward.3} parent=0
    _
  %s6 = ssub.s32 1, %s4
  %s7 = scalar_select 0, %s6, %s4
  // Predicated region
  $region2: #{decoder_rnn_forward.3} parent=0 // pred_check
    _
  $region3: #{decoder_rnn_forward.3} parent=0 // pred_check_branch
    %9 = sbr.rel (0) target = $region5
  $region4: #{decoder_rnn_forward.3} parent=0 // pred_region
    _
  $region5: #{decoder_rnn_forward.3} parent=0 // pred_fallthru
    _
  // Predicated region
  $region6: #{decoder_rnn_forward.3} parent=0 // pred_check
    _
  $region7: #{decoder_rnn_forward.3} parent=0 // pred_check_branch
    %11 = sbr.rel (0) target = $region9
  $region8: #{decoder_rnn_forward.3} parent=0 // pred_region
    _
  $region9: #{decoder_rnn_forward.3} parent=0 // pred_fallthru
    _
  // Predicated region
  $region10: #{decoder_rnn_forward.3} parent=0 // pred_check
    _
  $region11: #{decoder_rnn_forward.3} parent=0 // pred_check_branch
    %13 = sbr.rel (0) target = $region13
  $region12: #{decoder_rnn_forward.3} parent=0 // pred_region
    _
  $region13: #{decoder_rnn_forward.3} parent=0 // pred_fallthru
    _
  %v14 = vld [vmem:[%s0] sm:$0xf]
  %v15 = vld [vmem:[%s0 + $0x4] sm:$0xf]
  %v16 = vld [vmem:[%s0 + $0x8] sm:$0xf]
  %v17 = vld [vmem:[%s0 + $0xc] sm:$0xf]
  %v18 = vld [vmem:[%s0 + $0x10] sm:$0xf]
  %v19 = vld [vmem:[%s0 + $0x14] sm:$0xf]
  %v20 = vld [vmem:[%s0 + $0x18] sm:$0xf]
  %v21 = vld [vmem:[%s0 + $0x1c] sm:$0xf]
  %v22 = vld [vmem:[%s1] sm:$0xff]
  %v23 = vld [vmem:[%s1 + $0x8] sm:$0xff]
  %v24 = vld [vmem:[%s1 + $0x10] sm:$0xff]
  %v25 = vld [vmem:[%s1 + $0x18] sm:$0xff]
  %v26 = vld [vmem:[%s1 + $0x20] sm:$0xff]
  %v27 = vld [vmem:[%s1 + $0x28] sm:$0xff]
  %v28 = vld [vmem:[%s1 + $0x30] sm:$0xff]
  %v29 = vld [vmem:[%s1 + $0x38] sm:$0xff]
  %v30 = vld [vmem:[%s1 + $0x40] sm:$0xff]
  %v31 = vld [vmem:[%s1 + $0x48] sm:$0xff]
  %v32 = vld [vmem:[%s1 + $0x50] sm:$0xff]
  %v33 = vld [vmem:[%s1 + $0x58] sm:$0xff]
  %v34 = vld [vmem:[%s1 + $0x60] sm:$0xff]
  %v35 = vld [vmem:[%s1 + $0x68] sm:$0xff]
  %v36 = vld [vmem:[%s1 + $0x70] sm:$0xff]
  %v37 = vld [vmem:[%s1 + $0x78] sm:$0xff]
  %v38 = vld [vmem:[%s1 + $0x80] sm:$0xff]
  %v39 = vld [vmem:[%s1 + $0x88] sm:$0xff]
  %v40 = vld [vmem:[%s1 + $0x90] sm:$0xff]
  %v41 = vld [vmem:[%s1 + $0x98] sm:$0xff]
  %v42 = vld [vmem:[%s1 + $0xa0] sm:$0xff]
  %v43 = vld [vmem:[%s1 + $0xa8] sm:$0xff]
  %v44 = vld [vmem:[%s1 + $0xb0] sm:$0xff]
  %v45 = vld [vmem:[%s1 + $0xb8] sm:$0xff]
  %v46 = vld [vmem:[%s1 + $0xc0] sm:$0xff]
  %v47 = vld [vmem:[%s1 + $0xc8] sm:$0xff]
  %v48 = vld [vmem:[%s1 + $0xd0] sm:$0xff]
  %v49 = vld [vmem:[%s1 + $0xd8] sm:$0xff]
  %v50 = vld [vmem:[%s1 + $0xe0] sm:$0xff]
  %v51 = vld [vmem:[%s1 + $0xe8] sm:$0xff]
  %v52 = vld [vmem:[%s1 + $0xf0] sm:$0xff]
  %v53 = vld [vmem:[%s1 + $0xf8] sm:$0xff]
  %v54 = vld [vmem:[%s2] sm:$0xf]
  %v56 = vperm.slane %v54, 0
  %v57 = vperm.slane %v54, 1
  %v58 = vperm.slane %v54, 2
  %v59 = vperm.slane %v54, 3
  %v72 = vunpack.c.l.b16 %v14
  %v73 = vunpack.c.l.b16 %v15
  %v74 = vunpack.c.l.b16 %v16
  %v75 = vunpack.c.l.b16 %v17
  %v76 = vunpack.c.l.b16 %v18
  %v77 = vunpack.c.l.b16 %v19
  %v78 = vunpack.c.l.b16 %v20
  %v79 = vunpack.c.l.b16 %v21
  %v80 = vpack.c.b16 %v73, %v72
  %v81 = vpack.c.b16 %v75, %v74
  %v82 = vpack.c.b16 %v77, %v76
  %v83 = vpack.c.b16 %v79, %v78
  %v120 = vunpack.c.l.b16 %v22
  %v121 = vunpack.c.h.b16 %v22
  %v122 = vunpack.c.l.b16 %v23
  %v123 = vunpack.c.h.b16 %v23
  %v124 = vunpack.c.l.b16 %v24
  %v125 = vunpack.c.h.b16 %v24
  %v126 = vunpack.c.l.b16 %v25
  %v127 = vunpack.c.h.b16 %v25
  %v128 = vunpack.c.l.b16 %v26
  %v129 = vunpack.c.h.b16 %v26
  %v130 = vunpack.c.l.b16 %v27
  %v131 = vunpack.c.h.b16 %v27
  %v132 = vunpack.c.l.b16 %v28
  %v133 = vunpack.c.h.b16 %v28
  %v134 = vunpack.c.l.b16 %v29
  %v135 = vunpack.c.h.b16 %v29
  %v136 = vunpack.c.l.b16 %v30
  %v137 = vunpack.c.h.b16 %v30
  %v138 = vunpack.c.l.b16 %v31
  %v139 = vunpack.c.h.b16 %v31
  %v140 = vunpack.c.l.b16 %v32
  %v141 = vunpack.c.h.b16 %v32
  %v142 = vunpack.c.l.b16 %v33
  %v143 = vunpack.c.h.b16 %v33
  %v144 = vunpack.c.l.b16 %v34
  %v145 = vunpack.c.h.b16 %v34
  %v146 = vunpack.c.l.b16 %v35
  %v147 = vunpack.c.h.b16 %v35
  %v148 = vunpack.c.l.b16 %v36
  %v149 = vunpack.c.h.b16 %v36
  %v150 = vunpack.c.l.b16 %v37
  %v151 = vunpack.c.h.b16 %v37
  %v152 = vunpack.c.l.b16 %v38
  %v153 = vunpack.c.h.b16 %v38
  %v154 = vunpack.c.l.b16 %v39
  %v155 = vunpack.c.h.b16 %v39
  %v156 = vunpack.c.l.b16 %v40
  %v157 = vunpack.c.h.b16 %v40
  %v158 = vunpack.c.l.b16 %v41
  %v159 = vunpack.c.h.b16 %v41
  %v160 = vunpack.c.l.b16 %v42
  %v161 = vunpack.c.h.b16 %v42
  %v162 = vunpack.c.l.b16 %v43
  %v163 = vunpack.c.h.b16 %v43
  %v164 = vunpack.c.l.b16 %v44
  %v165 = vunpack.c.h.b16 %v44
  %v166 = vunpack.c.l.b16 %v45
  %v167 = vunpack.c.h.b16 %v45
  %v168 = vunpack.c.l.b16 %v46
  %v169 = vunpack.c.h.b16 %v46
  %v170 = vunpack.c.l.b16 %v47
  %v171 = vunpack.c.h.b16 %v47
  %v172 = vunpack.c.l.b16 %v48
  %v173 = vunpack.c.h.b16 %v48
  %v174 = vunpack.c.l.b16 %v49
  %v175 = vunpack.c.h.b16 %v49
  %v176 = vunpack.c.l.b16 %v50
  %v177 = vunpack.c.h.b16 %v50
  %v178 = vunpack.c.l.b16 %v51
  %v179 = vunpack.c.h.b16 %v51
  %v180 = vunpack.c.l.b16 %v52
  %v181 = vunpack.c.h.b16 %v52
  %v182 = vunpack.c.l.b16 %v53
  %v183 = vunpack.c.h.b16 %v53
  %v184 = vpack.c.b16 %v124, %v120
  %v185 = vpack.c.b16 %v125, %v121
  %v186 = vpack.c.b16 %v126, %v122
  %v187 = vpack.c.b16 %v127, %v123
  %v188 = vpack.c.b16 %v132, %v128
  %v189 = vpack.c.b16 %v133, %v129
  %v190 = vpack.c.b16 %v134, %v130
  %v191 = vpack.c.b16 %v135, %v131
  %v192 = vpack.c.b16 %v140, %v136
  %v193 = vpack.c.b16 %v141, %v137
  %v194 = vpack.c.b16 %v142, %v138
  %v195 = vpack.c.b16 %v143, %v139
  %v196 = vpack.c.b16 %v148, %v144
  %v197 = vpack.c.b16 %v149, %v145
  %v198 = vpack.c.b16 %v150, %v146
  %v199 = vpack.c.b16 %v151, %v147
  %v200 = vpack.c.b16 %v156, %v152
  %v201 = vpack.c.b16 %v157, %v153
  %v202 = vpack.c.b16 %v158, %v154
  %v203 = vpack.c.b16 %v159, %v155
  %v204 = vpack.c.b16 %v164, %v160
  %v205 = vpack.c.b16 %v165, %v161
  %v206 = vpack.c.b16 %v166, %v162
  %v207 = vpack.c.b16 %v167, %v163
  %v208 = vpack.c.b16 %v172, %v168
  %v209 = vpack.c.b16 %v173, %v169
  %v210 = vpack.c.b16 %v174, %v170
  %v211 = vpack.c.b16 %v175, %v171
  %v212 = vpack.c.b16 %v180, %v176
  %v213 = vpack.c.b16 %v181, %v177
  %v214 = vpack.c.b16 %v182, %v178
  %v215 = vpack.c.b16 %v183, %v179
  %248 = vmatpush.bf16.msra.mxu0 %v212
  %249 = vmatpush.bf16.msra.mxu0 %v208
  %250 = vmatpush.bf16.msra.mxu0 %v204
  %251 = vmatpush.bf16.msra.mxu0 %v200
  %252 = vmatpush.bf16.msra.mxu0 %v196
  %253 = vmatpush.bf16.msra.mxu0 %v192
  %254 = vmatpush.bf16.msra.mxu0 %v188
  %255 = vmatpush.bf16.msra.mxu0 %v184
  %256 = vmatmul.bf16.gmra.mxu0 %v80
  %v257 = vpop.f32.mrf.mxu0
  %v258 = vadd.f32 %v56, %v257
  %v259 = vpop.f32.mrf.mxu0
  %v260 = vadd.f32 %v56, %v259
  %261 = vmatmul.bf16.gmra.mxu0 %v81
  %v262 = vpop.f32.mrf.mxu0
  %v263 = vadd.f32 %v56, %v262
  %v264 = vpop.f32.mrf.mxu0
  %v265 = vadd.f32 %v56, %v264
  %266 = vmatmul.bf16.gmra.mxu0 %v82
  %v267 = vpop.f32.mrf.mxu0
  %v268 = vadd.f32 %v56, %v267
  %v269 = vpop.f32.mrf.mxu0
  %v270 = vadd.f32 %v56, %v269
  %271 = vmatmul.bf16.gmra.mxu0 %v83
  %v272 = vpop.f32.mrf.mxu0
  %v273 = vadd.f32 %v56, %v272
  %v274 = vpop.f32.mrf.mxu0
  %v275 = vadd.f32 %v56, %v274
  %276 = vdwg.mxu0
  %277 = vmatpush.bf16.msra.mxu0 %v213
  %278 = vmatpush.bf16.msra.mxu0 %v209
  %279 = vmatpush.bf16.msra.mxu0 %v205
  %280 = vmatpush.bf16.msra.mxu0 %v201
  %281 = vmatpush.bf16.msra.mxu0 %v197
  %282 = vmatpush.bf16.msra.mxu0 %v193
  %283 = vmatpush.bf16.msra.mxu0 %v189
  %284 = vmatpush.bf16.msra.mxu0 %v185
  %285 = vmatmul.bf16.gmra.mxu0 %v80
  %v286 = vpop.f32.mrf.mxu0
  %v287 = vadd.f32 %v57, %v286
  %v288 = vpop.f32.mrf.mxu0
  %v289 = vadd.f32 %v57, %v288
  %290 = vmatmul.bf16.gmra.mxu0 %v81
  %v291 = vpop.f32.mrf.mxu0
  %v292 = vadd.f32 %v57, %v291
  %v293 = vpop.f32.mrf.mxu0
  %v294 = vadd.f32 %v57, %v293
  %295 = vmatmul.bf16.gmra.mxu0 %v82
  %v296 = vpop.f32.mrf.mxu0
  %v297 = vadd.f32 %v57, %v296
  %v298 = vpop.f32.mrf.mxu0
  %v299 = vadd.f32 %v57, %v298
  %300 = vmatmul.bf16.gmra.mxu0 %v83
  %v301 = vpop.f32.mrf.mxu0
  %v302 = vadd.f32 %v57, %v301
  %v303 = vpop.f32.mrf.mxu0
  %v304 = vadd.f32 %v57, %v303
  %305 = vdwg.mxu0
  %306 = vmatpush.bf16.msra.mxu0 %v214
  %307 = vmatpush.bf16.msra.mxu0 %v210
  %308 = vmatpush.bf16.msra.mxu0 %v206
  %309 = vmatpush.bf16.msra.mxu0 %v202
  %310 = vmatpush.bf16.msra.mxu0 %v198
  %311 = vmatpush.bf16.msra.mxu0 %v194
  %312 = vmatpush.bf16.msra.mxu0 %v190
  %313 = vmatpush.bf16.msra.mxu0 %v186
  %314 = vmatmul.bf16.gmra.mxu0 %v80
  %v315 = vpop.f32.mrf.mxu0
  %v316 = vadd.f32 %v58, %v315
  %v317 = vpop.f32.mrf.mxu0
  %v318 = vadd.f32 %v58, %v317
  %319 = vmatmul.bf16.gmra.mxu0 %v81
  %v320 = vpop.f32.mrf.mxu0
  %v321 = vadd.f32 %v58, %v320
  %v322 = vpop.f32.mrf.mxu0
  %v323 = vadd.f32 %v58, %v322
  %324 = vmatmul.bf16.gmra.mxu0 %v82
  %v325 = vpop.f32.mrf.mxu0
  %v326 = vadd.f32 %v58, %v325
  %v327 = vpop.f32.mrf.mxu0
  %v328 = vadd.f32 %v58, %v327
  %329 = vmatmul.bf16.gmra.mxu0 %v83
  %v330 = vpop.f32.mrf.mxu0
  %v331 = vadd.f32 %v58, %v330
  %v332 = vpop.f32.mrf.mxu0
  %v333 = vadd.f32 %v58, %v332
  %334 = vdwg.mxu0
  %335 = vmatpush.bf16.msra.mxu0 %v215
  %336 = vmatpush.bf16.msra.mxu0 %v211
  %337 = vmatpush.bf16.msra.mxu0 %v207
  %338 = vmatpush.bf16.msra.mxu0 %v203
  %339 = vmatpush.bf16.msra.mxu0 %v199
  %340 = vmatpush.bf16.msra.mxu0 %v195
  %341 = vmatpush.bf16.msra.mxu0 %v191
  %342 = vmatpush.bf16.msra.mxu0 %v187
  %343 = vmatmul.bf16.gmra.mxu0 %v80
  %v344 = vpop.f32.mrf.mxu0
  %v345 = vadd.f32 %v59, %v344
  %v346 = vpop.f32.mrf.mxu0
  %v347 = vadd.f32 %v59, %v346
  %348 = vmatmul.bf16.gmra.mxu0 %v81
  %v349 = vpop.f32.mrf.mxu0
  %v350 = vadd.f32 %v59, %v349
  %v351 = vpop.f32.mrf.mxu0
  %v352 = vadd.f32 %v59, %v351
  %353 = vmatmul.bf16.gmra.mxu0 %v82
  %v354 = vpop.f32.mrf.mxu0
  %v355 = vadd.f32 %v59, %v354
  %v356 = vpop.f32.mrf.mxu0
  %v357 = vadd.f32 %v59, %v356
  %358 = vmatmul.bf16.gmra.mxu0 %v83
  %v359 = vpop.f32.mrf.mxu0
  %v360 = vadd.f32 %v59, %v359
  %v361 = vpop.f32.mrf.mxu0
  %v362 = vadd.f32 %v59, %v361
  %363 = vdwg.mxu0
  %364 = vst [vmem:[%s3] sm:$0xff] %v258
  %365 = vst [vmem:[%s3 + $0x8] sm:$0xff] %v287
  %366 = vst [vmem:[%s3 + $0x10] sm:$0xff] %v316
  %367 = vst [vmem:[%s3 + $0x18] sm:$0xff] %v345
  %368 = vst [vmem:[%s3 + $0x20] sm:$0xff] %v260
  %369 = vst [vmem:[%s3 + $0x28] sm:$0xff] %v289
  %370 = vst [vmem:[%s3 + $0x30] sm:$0xff] %v318
  %371 = vst [vmem:[%s3 + $0x38] sm:$0xff] %v347
  %372 = vst [vmem:[%s3 + $0x40] sm:$0xff] %v263
  %373 = vst [vmem:[%s3 + $0x48] sm:$0xff] %v292
  %374 = vst [vmem:[%s3 + $0x50] sm:$0xff] %v321
  %375 = vst [vmem:[%s3 + $0x58] sm:$0xff] %v350
  %376 = vst [vmem:[%s3 + $0x60] sm:$0xff] %v265
  %377 = vst [vmem:[%s3 + $0x68] sm:$0xff] %v294
  %378 = vst [vmem:[%s3 + $0x70] sm:$0xff] %v323
  %379 = vst [vmem:[%s3 + $0x78] sm:$0xff] %v352
  %380 = vst [vmem:[%s3 + $0x80] sm:$0xff] %v268
  %381 = vst [vmem:[%s3 + $0x88] sm:$0xff] %v297
  %382 = vst [vmem:[%s3 + $0x90] sm:$0xff] %v326
  %383 = vst [vmem:[%s3 + $0x98] sm:$0xff] %v355
  %384 = vst [vmem:[%s3 + $0xa0] sm:$0xff] %v270
  %385 = vst [vmem:[%s3 + $0xa8] sm:$0xff] %v299
  %386 = vst [vmem:[%s3 + $0xb0] sm:$0xff] %v328
  %387 = vst [vmem:[%s3 + $0xb8] sm:$0xff] %v357
  %388 = vst [vmem:[%s3 + $0xc0] sm:$0xff] %v273
  %389 = vst [vmem:[%s3 + $0xc8] sm:$0xff] %v302
  %390 = vst [vmem:[%s3 + $0xd0] sm:$0xff] %v331
  %391 = vst [vmem:[%s3 + $0xd8] sm:$0xff] %v360
  %392 = vst [vmem:[%s3 + $0xe0] sm:$0xff] %v275
  %393 = vst [vmem:[%s3 + $0xe8] sm:$0xff] %v304
  %394 = vst [vmem:[%s3 + $0xf0] sm:$0xff] %v333
  %395 = vst [vmem:[%s3 + $0xf8] sm:$0xff] %v362
  // Predicated region
  $region14: #{decoder_rnn_forward.3} parent=0 // pred_check
    _
  $region15: #{decoder_rnn_forward.3} parent=0 // pred_check_branch
    %397 = sbr.rel (0) target = $region17
  $region16: #{decoder_rnn_forward.3} parent=0 // pred_region
    _
  $region17: #{decoder_rnn_forward.3} parent=0 // pred_fallthru
    _
  // Predicated region
  $region18: #{decoder_rnn_forward.3} parent=0 // pred_check
    _
  $region19: #{decoder_rnn_forward.3} parent=0 // pred_check_branch
    %399 = sbr.rel (0) target = $region21
  $region20: #{decoder_rnn_forward.3} parent=0 // pred_region
    _
  $region21: #{decoder_rnn_forward.3} parent=0 // pred_fallthru
    _

// kernel: decoder_rnn_forward.4
$region0: #{decoder_rnn_forward.4}
  #allocation0 [shape = 'u32[]', space=smem, size = 0x4, offset = 0x4, fixed_abs, tag = 'smem constant byte address 0x4 - core index']
  #allocation1 [shape = 'u32[72,128]{1,0:T(1,128)}', space=vmem, size = 0x9000, scoped, tag = 'internal scratch']
  #allocation2 [shape = 'f32[8,128]{1,0:T(8,128)}', space=vmem, size = 0x1000, scoped, tag = 'scratch operand']
  #allocation3 [shape = 'f32[8,128]{1,0:T(8,128)}', space=vmem, size = 0x1000, scoped, tag = 'scratch operand']
  %s0 = inlined_call_operand.vmem [shape: f32[8,8,512], index: 0, kind: input, shape index: {}]
  %s1 = inlined_call_operand.vmem [shape: bf16[128,512], index: 1, kind: input, shape index: {}]
  %s2 = inlined_call_operand.vmem [shape: f32[8,8,128], index: 2, kind: output, shape index: {}]
  %s3 = sld [smem:[#allocation0]]
  $region22: #{decoder_rnn_forward.4} parent=0
    _
  %s5 = ssub.s32 1, %s3
  %s6 = scalar_select 0, %s5, %s3
  // Predicated region
  $region2: #{decoder_rnn_forward.4} parent=0 // pred_check
    _
  $region3: #{decoder_rnn_forward.4} parent=0 // pred_check_branch
    %8 = sbr.rel (0) target = $region5
  $region4: #{decoder_rnn_forward.4} parent=0 // pred_region
    _
  $region5: #{decoder_rnn_forward.4} parent=0 // pred_fallthru
    _
  // Predicated region
  $region6: #{decoder_rnn_forward.4} parent=0 // pred_check
    _
  $region7: #{decoder_rnn_forward.4} parent=0 // pred_check_branch
    %10 = sbr.rel (0) target = $region9
  $region8: #{decoder_rnn_forward.4} parent=0 // pred_region
    _
  $region9: #{decoder_rnn_forward.4} parent=0 // pred_fallthru
    _
  %p11 = scmp.eq.s32.totalorder 0, 0
  // Predicated region
  $region10: #{decoder_rnn_forward.4} parent=0 // pred_check
    %p12 = pneg %p11
  $region11: #{decoder_rnn_forward.4} parent=0 // pred_check_branch
    %14 = sbr.rel (%p12) target = $region13
  $region12: #{decoder_rnn_forward.4} parent=0 // pred_region
    %15 = vst [vmem:[#allocation2] sm:$0xff] 0.0
    %16 = vst [vmem:[#allocation3] sm:$0xff] 0.0
  $region13: #{decoder_rnn_forward.4} parent=0 // pred_fallthru
    _
  %v17 = vld [vmem:[%s1] sm:$0xff]
  %v18 = vld [vmem:[%s1 + $0x8] sm:$0xff]
  %v19 = vld [vmem:[%s1 + $0x10] sm:$0xff]
  %v20 = vld [vmem:[%s1 + $0x18] sm:$0xff]
  %v21 = vld [vmem:[%s1 + $0x20] sm:$0xff]
  %v22 = vld [vmem:[%s1 + $0x28] sm:$0xff]
  %v23 = vld [vmem:[%s1 + $0x30] sm:$0xff]
  %v24 = vld [vmem:[%s1 + $0x38] sm:$0xff]
  %v25 = vld [vmem:[%s1 + $0x40] sm:$0xff]
  %v26 = vld [vmem:[%s1 + $0x48] sm:$0xff]
  %v27 = vld [vmem:[%s1 + $0x50] sm:$0xff]
  %v28 = vld [vmem:[%s1 + $0x58] sm:$0xff]
  %v29 = vld [vmem:[%s1 + $0x60] sm:$0xff]
  %v30 = vld [vmem:[%s1 + $0x68] sm:$0xff]
  %v31 = vld [vmem:[%s1 + $0x70] sm:$0xff]
  %v32 = vld [vmem:[%s1 + $0x78] sm:$0xff]
  %v33 = vld [vmem:[%s1 + $0x80] sm:$0xff]
  %v34 = vld [vmem:[%s1 + $0x88] sm:$0xff]
  %v35 = vld [vmem:[%s1 + $0x90] sm:$0xff]
  %v36 = vld [vmem:[%s1 + $0x98] sm:$0xff]
  %v37 = vld [vmem:[%s1 + $0xa0] sm:$0xff]
  %v38 = vld [vmem:[%s1 + $0xa8] sm:$0xff]
  %v39 = vld [vmem:[%s1 + $0xb0] sm:$0xff]
  %v40 = vld [vmem:[%s1 + $0xb8] sm:$0xff]
  %v41 = vld [vmem:[%s1 + $0xc0] sm:$0xff]
  %v42 = vld [vmem:[%s1 + $0xc8] sm:$0xff]
  %v43 = vld [vmem:[%s1 + $0xd0] sm:$0xff]
  %v44 = vld [vmem:[%s1 + $0xd8] sm:$0xff]
  %v45 = vld [vmem:[%s1 + $0xe0] sm:$0xff]
  %v46 = vld [vmem:[%s1 + $0xe8] sm:$0xff]
  %v47 = vld [vmem:[%s1 + $0xf0] sm:$0xff]
  %v48 = vld [vmem:[%s1 + $0xf8] sm:$0xff]
  %v49 = vld [vmem:[#allocation2] sm:$0xff]
  %v50 = vld [vmem:[#allocation3] sm:$0xff]
  %v51 = vld [vmem:[%s0] sm:$0xff]
  %v52 = vld [vmem:[%s0 + $0x8] sm:$0xff]
  %v53 = vld [vmem:[%s0 + $0x10] sm:$0xff]
  %v54 = vld [vmem:[%s0 + $0x18] sm:$0xff]
  %v55 = vpack.c.bf16 %v49, %v49
  %v88 = vunpack.c.l.b16 %v17
  %v89 = vunpack.c.h.b16 %v17
  %v90 = vunpack.c.l.b16 %v18
  %v91 = vunpack.c.h.b16 %v18
  %v92 = vunpack.c.l.b16 %v19
  %v93 = vunpack.c.h.b16 %v19
  %v94 = vunpack.c.l.b16 %v20
  %v95 = vunpack.c.h.b16 %v20
  %v96 = vunpack.c.l.b16 %v21
  %v97 = vunpack.c.h.b16 %v21
  %v98 = vunpack.c.l.b16 %v22
  %v99 = vunpack.c.h.b16 %v22
  %v100 = vunpack.c.l.b16 %v23
  %v101 = vunpack.c.h.b16 %v23
  %v102 = vunpack.c.l.b16 %v24
  %v103 = vunpack.c.h.b16 %v24
  %v104 = vunpack.c.l.b16 %v25
  %v105 = vunpack.c.h.b16 %v25
  %v106 = vunpack.c.l.b16 %v26
  %v107 = vunpack.c.h.b16 %v26
  %v108 = vunpack.c.l.b16 %v27
  %v109 = vunpack.c.h.b16 %v27
  %v110 = vunpack.c.l.b16 %v28
  %v111 = vunpack.c.h.b16 %v28
  %v112 = vunpack.c.l.b16 %v29
  %v113 = vunpack.c.h.b16 %v29
  %v114 = vunpack.c.l.b16 %v30
  %v115 = vunpack.c.h.b16 %v30
  %v116 = vunpack.c.l.b16 %v31
  %v117 = vunpack.c.h.b16 %v31
  %v118 = vunpack.c.l.b16 %v32
  %v119 = vunpack.c.h.b16 %v32
  %v120 = vunpack.c.l.b16 %v33
  %v121 = vunpack.c.h.b16 %v33
  %v122 = vunpack.c.l.b16 %v34
  %v123 = vunpack.c.h.b16 %v34
  %v124 = vunpack.c.l.b16 %v35
  %v125 = vunpack.c.h.b16 %v35
  %v126 = vunpack.c.l.b16 %v36
  %v127 = vunpack.c.h.b16 %v36
  %v128 = vunpack.c.l.b16 %v37
  %v129 = vunpack.c.h.b16 %v37
  %v130 = vunpack.c.l.b16 %v38
  %v131 = vunpack.c.h.b16 %v38
  %v132 = vunpack.c.l.b16 %v39
  %v133 = vunpack.c.h.b16 %v39
  %v134 = vunpack.c.l.b16 %v40
  %v135 = vunpack.c.h.b16 %v40
  %v136 = vunpack.c.l.b16 %v41
  %v137 = vunpack.c.h.b16 %v41
  %v138 = vunpack.c.l.b16 %v42
  %v139 = vunpack.c.h.b16 %v42
  %v140 = vunpack.c.l.b16 %v43
  %v141 = vunpack.c.h.b16 %v43
  %v142 = vunpack.c.l.b16 %v44
  %v143 = vunpack.c.h.b16 %v44
  %v144 = vunpack.c.l.b16 %v45
  %v145 = vunpack.c.h.b16 %v45
  %v146 = vunpack.c.l.b16 %v46
  %v147 = vunpack.c.h.b16 %v46
  %v148 = vunpack.c.l.b16 %v47
  %v149 = vunpack.c.h.b16 %v47
  %v150 = vunpack.c.l.b16 %v48
  %v151 = vunpack.c.h.b16 %v48
  %v152 = vpack.c.b16 %v92, %v88
  %v153 = vpack.c.b16 %v93, %v89
  %v154 = vpack.c.b16 %v94, %v90
  %v155 = vpack.c.b16 %v95, %v91
  %v156 = vpack.c.b16 %v100, %v96
  %v157 = vpack.c.b16 %v101, %v97
  %v158 = vpack.c.b16 %v102, %v98
  %v159 = vpack.c.b16 %v103, %v99
  %v160 = vpack.c.b16 %v108, %v104
  %v161 = vpack.c.b16 %v109, %v105
  %v162 = vpack.c.b16 %v110, %v106
  %v163 = vpack.c.b16 %v111, %v107
  %v164 = vpack.c.b16 %v116, %v112
  %v165 = vpack.c.b16 %v117, %v113
  %v166 = vpack.c.b16 %v118, %v114
  %v167 = vpack.c.b16 %v119, %v115
  %v168 = vpack.c.b16 %v124, %v120
  %v169 = vpack.c.b16 %v125, %v121
  %v170 = vpack.c.b16 %v126, %v122
  %v171 = vpack.c.b16 %v127, %v123
  %v172 = vpack.c.b16 %v132, %v128
  %v173 = vpack.c.b16 %v133, %v129
  %v174 = vpack.c.b16 %v134, %v130
  %v175 = vpack.c.b16 %v135, %v131
  %v176 = vpack.c.b16 %v140, %v136
  %v177 = vpack.c.b16 %v141, %v137
  %v178 = vpack.c.b16 %v142, %v138
  %v179 = vpack.c.b16 %v143, %v139
  %v180 = vpack.c.b16 %v148, %v144
  %v181 = vpack.c.b16 %v149, %v145
  %v182 = vpack.c.b16 %v150, %v146
  %v183 = vpack.c.b16 %v151, %v147
  %216 = vmatpush.bf16.msra.mxu0 %v180
  %217 = vmatpush.bf16.msra.mxu0 %v176
  %218 = vmatpush.bf16.msra.mxu0 %v172
  %219 = vmatpush.bf16.msra.mxu0 %v168
  %220 = vmatpush.bf16.msra.mxu0 %v164
  %221 = vmatpush.bf16.msra.mxu0 %v160
  %222 = vmatpush.bf16.msra.mxu0 %v156
  %223 = vmatpush.bf16.msra.mxu0 %v152
  %224 = vmatmul.bf16.gmra.mxu0 %v55
  %v225 = vpop.f32.mrf.mxu0
  %v226 = vadd.f32 0.0, %v225
  %v227 = vpop.f32.mrf.mxu0
  %228 = vdwg.mxu0
  %229 = vmatpush.bf16.msra.mxu0 %v181
  %230 = vmatpush.bf16.msra.mxu0 %v177
  %231 = vmatpush.bf16.msra.mxu0 %v173
  %232 = vmatpush.bf16.msra.mxu0 %v169
  %233 = vmatpush.bf16.msra.mxu0 %v165
  %234 = vmatpush.bf16.msra.mxu0 %v161
  %235 = vmatpush.bf16.msra.mxu0 %v157
  %236 = vmatpush.bf16.msra.mxu0 %v153
  %237 = vmatmul.bf16.gmra.mxu0 %v55
  %v238 = vpop.f32.mrf.mxu0
  %v239 = vadd.f32 0.0, %v238
  %v240 = vpop.f32.mrf.mxu0
  %241 = vdwg.mxu0
  %242 = vmatpush.bf16.msra.mxu0 %v182
  %243 = vmatpush.bf16.msra.mxu0 %v178
  %244 = vmatpush.bf16.msra.mxu0 %v174
  %245 = vmatpush.bf16.msra.mxu0 %v170
  %246 = vmatpush.bf16.msra.mxu0 %v166
  %247 = vmatpush.bf16.msra.mxu0 %v162
  %248 = vmatpush.bf16.msra.mxu0 %v158
  %249 = vmatpush.bf16.msra.mxu0 %v154
  %250 = vmatmul.bf16.gmra.mxu0 %v55
  %v251 = vpop.f32.mrf.mxu0
  %v252 = vadd.f32 0.0, %v251
  %v253 = vpop.f32.mrf.mxu0
  %254 = vdwg.mxu0
  %255 = vmatpush.bf16.msra.mxu0 %v183
  %256 = vmatpush.bf16.msra.mxu0 %v179
  %257 = vmatpush.bf16.msra.mxu0 %v175
  %258 = vmatpush.bf16.msra.mxu0 %v171
  %259 = vmatpush.bf16.msra.mxu0 %v167
  %260 = vmatpush.bf16.msra.mxu0 %v163
  %261 = vmatpush.bf16.msra.mxu0 %v159
  %262 = vmatpush.bf16.msra.mxu0 %v155
  %263 = vmatmul.bf16.gmra.mxu0 %v55
  %v264 = vpop.f32.mrf.mxu0
  %v265 = vadd.f32 0.0, %v264
  %v266 = vpop.f32.mrf.mxu0
  %267 = vdwg.mxu0
  %v268 = vadd.f32 %v51, %v226
  %v269 = vadd.f32 %v52, %v239
  %v270 = vadd.f32 %v53, %v252
  %v271 = vadd.f32 %v54, %v265
  %v272 = vxor.u32 %v268, 2147483648
  %v273 = vmul.f32 %v272, 1.442695
  %v274 = vpow.pop %v273
  %v275 = vadd.f32 %v274, 1.0
  %v276 = vrcp.pop %v275
  %v277 = vmul.f32 %v275, %v276
  %v278 = vsub.f32 1.0, %v277
  %v279 = vmul.f32 %v276, %v278
  %v280 = vadd.f32 %v276, %v279
  %vm281 = vweird.f32 %v275
  %vm282 = vweird.f32 %v276
  %vm283 = vmor %vm281, %vm282
  %v284 = vsel %vm283, %v276, %v280
  %v285 = vand.u32 2147483647, %v275
  %vm286 = vcmp.eq.f32.partialorder %v285, 8.507059e+37
  %v287 = vand.u32 %v275, 2147483648
  %v288 = vor.u32 1.1754944e-38, %v287
  %v289 = vsel %vm286, %v288, %v284
  %v290 = vmul.f32 1.0, %v289
  %v291 = vxor.u32 %v269, 2147483648
  %v292 = vmul.f32 %v291, 1.442695
  %v293 = vpow.pop %v292
  %v294 = vadd.f32 %v293, 1.0
  %v295 = vrcp.pop %v294
  %v296 = vmul.f32 %v294, %v295
  %v297 = vsub.f32 1.0, %v296
  %v298 = vmul.f32 %v295, %v297
  %v299 = vadd.f32 %v295, %v298
  %vm300 = vweird.f32 %v294
  %vm301 = vweird.f32 %v295
  %vm302 = vmor %vm300, %vm301
  %v303 = vsel %vm302, %v295, %v299
  %v304 = vand.u32 2147483647, %v294
  %vm305 = vcmp.eq.f32.partialorder %v304, 8.507059e+37
  %v306 = vand.u32 %v294, 2147483648
  %v307 = vor.u32 1.1754944e-38, %v306
  %v308 = vsel %vm305, %v307, %v303
  %v309 = vmul.f32 1.0, %v308
  %v310 = vtanh.pop %v270
  %v311 = vxor.u32 %v271, 2147483648
  %v312 = vmul.f32 %v311, 1.442695
  %v313 = vpow.pop %v312
  %v314 = vadd.f32 %v313, 1.0
  %v315 = vrcp.pop %v314
  %v316 = vmul.f32 %v314, %v315
  %v317 = vsub.f32 1.0, %v316
  %v318 = vmul.f32 %v315, %v317
  %v319 = vadd.f32 %v315, %v318
  %vm320 = vweird.f32 %v314
  %vm321 = vweird.f32 %v315
  %vm322 = vmor %vm320, %vm321
  %v323 = vsel %vm322, %v315, %v319
  %v324 = vand.u32 2147483647, %v314
  %vm325 = vcmp.eq.f32.partialorder %v324, 8.507059e+37
  %v326 = vand.u32 %v314, 2147483648
  %v327 = vor.u32 1.1754944e-38, %v326
  %v328 = vsel %vm325, %v327, %v323
  %v329 = vmul.f32 1.0, %v328
  %v330 = vmul.f32 %v309, %v50
  %v331 = vmul.f32 %v290, %v310
  %v332 = vadd.f32 %v330, %v331
  %v333 = vtanh.pop %v332
  %v334 = vmul.f32 %v329, %v333
  %335 = vst [vmem:[%s2] sm:$0xff] %v334
  %s336 = scalar_lea.vmem %s0, 32
  %v337 = vld [vmem:[%s336] sm:$0xff]
  %v338 = vld [vmem:[%s336 + $0x8] sm:$0xff]
  %v339 = vld [vmem:[%s336 + $0x10] sm:$0xff]
  %v340 = vld [vmem:[%s336 + $0x18] sm:$0xff]
  %v341 = vpack.c.bf16 %v334, %v334
  %342 = vmatpush.bf16.msra.mxu0 %v180
  %343 = vmatpush.bf16.msra.mxu0 %v176
  %344 = vmatpush.bf16.msra.mxu0 %v172
  %345 = vmatpush.bf16.msra.mxu0 %v168
  %346 = vmatpush.bf16.msra.mxu0 %v164
  %347 = vmatpush.bf16.msra.mxu0 %v160
  %348 = vmatpush.bf16.msra.mxu0 %v156
  %349 = vmatpush.bf16.msra.mxu0 %v152
  %350 = vmatmul.bf16.gmra.mxu0 %v341
  %v351 = vpop.f32.mrf.mxu0
  %v352 = vadd.f32 0.0, %v351
  %v353 = vpop.f32.mrf.mxu0
  %354 = vdwg.mxu0
  %355 = vmatpush.bf16.msra.mxu0 %v181
  %356 = vmatpush.bf16.msra.mxu0 %v177
  %357 = vmatpush.bf16.msra.mxu0 %v173
  %358 = vmatpush.bf16.msra.mxu0 %v169
  %359 = vmatpush.bf16.msra.mxu0 %v165
  %360 = vmatpush.bf16.msra.mxu0 %v161
  %361 = vmatpush.bf16.msra.mxu0 %v157
  %362 = vmatpush.bf16.msra.mxu0 %v153
  %363 = vmatmul.bf16.gmra.mxu0 %v341
  %v364 = vpop.f32.mrf.mxu0
  %v365 = vadd.f32 0.0, %v364
  %v366 = vpop.f32.mrf.mxu0
  %367 = vdwg.mxu0
  %368 = vmatpush.bf16.msra.mxu0 %v182
  %369 = vmatpush.bf16.msra.mxu0 %v178
  %370 = vmatpush.bf16.msra.mxu0 %v174
  %371 = vmatpush.bf16.msra.mxu0 %v170
  %372 = vmatpush.bf16.msra.mxu0 %v166
  %373 = vmatpush.bf16.msra.mxu0 %v162
  %374 = vmatpush.bf16.msra.mxu0 %v158
  %375 = vmatpush.bf16.msra.mxu0 %v154
  %376 = vmatmul.bf16.gmra.mxu0 %v341
  %v377 = vpop.f32.mrf.mxu0
  %v378 = vadd.f32 0.0, %v377
  %v379 = vpop.f32.mrf.mxu0
  %380 = vdwg.mxu0
  %381 = vmatpush.bf16.msra.mxu0 %v183
  %382 = vmatpush.bf16.msra.mxu0 %v179
  %383 = vmatpush.bf16.msra.mxu0 %v175
  %384 = vmatpush.bf16.msra.mxu0 %v171
  %385 = vmatpush.bf16.msra.mxu0 %v167
  %386 = vmatpush.bf16.msra.mxu0 %v163
  %387 = vmatpush.bf16.msra.mxu0 %v159
  %388 = vmatpush.bf16.msra.mxu0 %v155
  %389 = vmatmul.bf16.gmra.mxu0 %v341
  %v390 = vpop.f32.mrf.mxu0
  %v391 = vadd.f32 0.0, %v390
  %v392 = vpop.f32.mrf.mxu0
  %393 = vdwg.mxu0
  %v394 = vadd.f32 %v337, %v352
  %v395 = vadd.f32 %v338, %v365
  %v396 = vadd.f32 %v339, %v378
  %v397 = vadd.f32 %v340, %v391
  %v398 = vxor.u32 %v394, 2147483648
  %v399 = vmul.f32 %v398, 1.442695
  %v400 = vpow.pop %v399
  %v401 = vadd.f32 %v400, 1.0
  %v402 = vrcp.pop %v401
  %v403 = vmul.f32 %v401, %v402
  %v404 = vsub.f32 1.0, %v403
  %v405 = vmul.f32 %v402, %v404
  %v406 = vadd.f32 %v402, %v405
  %vm407 = vweird.f32 %v401
  %vm408 = vweird.f32 %v402
  %vm409 = vmor %vm407, %vm408
  %v410 = vsel %vm409, %v402, %v406
  %v411 = vand.u32 2147483647, %v401
  %vm412 = vcmp.eq.f32.partialorder %v411, 8.507059e+37
  %v413 = vand.u32 %v401, 2147483648
  %v414 = vor.u32 1.1754944e-38, %v413
  %v415 = vsel %vm412, %v414, %v410
  %v416 = vmul.f32 1.0, %v415
  %v417 = vxor.u32 %v395, 2147483648
  %v418 = vmul.f32 %v417, 1.442695
  %v419 = vpow.pop %v418
  %v420 = vadd.f32 %v419, 1.0
  %v421 = vrcp.pop %v420
  %v422 = vmul.f32 %v420, %v421
  %v423 = vsub.f32 1.0, %v422
  %v424 = vmul.f32 %v421, %v423
  %v425 = vadd.f32 %v421, %v424
  %vm426 = vweird.f32 %v420
  %vm427 = vweird.f32 %v421
  %vm428 = vmor %vm426, %vm427
  %v429 = vsel %vm428, %v421, %v425
  %v430 = vand.u32 2147483647, %v420
  %vm431 = vcmp.eq.f32.partialorder %v430, 8.507059e+37
  %v432 = vand.u32 %v420, 2147483648
  %v433 = vor.u32 1.1754944e-38, %v432
  %v434 = vsel %vm431, %v433, %v429
  %v435 = vmul.f32 1.0, %v434
  %v436 = vtanh.pop %v396
  %v437 = vxor.u32 %v397, 2147483648
  %v438 = vmul.f32 %v437, 1.442695
  %v439 = vpow.pop %v438
  %v440 = vadd.f32 %v439, 1.0
  %v441 = vrcp.pop %v440
  %v442 = vmul.f32 %v440, %v441
  %v443 = vsub.f32 1.0, %v442
  %v444 = vmul.f32 %v441, %v443
  %v445 = vadd.f32 %v441, %v444
  %vm446 = vweird.f32 %v440
  %vm447 = vweird.f32 %v441
  %vm448 = vmor %vm446, %vm447
  %v449 = vsel %vm448, %v441, %v445
  %v450 = vand.u32 2147483647, %v440
  %vm451 = vcmp.eq.f32.partialorder %v450, 8.507059e+37
  %v452 = vand.u32 %v440, 2147483648
  %v453 = vor.u32 1.1754944e-38, %v452
  %v454 = vsel %vm451, %v453, %v449
  %v455 = vmul.f32 1.0, %v454
  %v456 = vmul.f32 %v435, %v332
  %v457 = vmul.f32 %v416, %v436
  %v458 = vadd.f32 %v456, %v457
  %v459 = vtanh.pop %v458
  %v460 = vmul.f32 %v455, %v459
  %s461 = scalar_lea.vmem %s2, 8
  %462 = vst [vmem:[%s461] sm:$0xff] %v460
  %s463 = scalar_lea.vmem %s0, 64
  %v464 = vld [vmem:[%s463] sm:$0xff]
  %v465 = vld [vmem:[%s463 + $0x8] sm:$0xff]
  %v466 = vld [vmem:[%s463 + $0x10] sm:$0xff]
  %v467 = vld [vmem:[%s463 + $0x18] sm:$0xff]
  %v468 = vpack.c.bf16 %v460, %v460
  %469 = vmatpush.bf16.msra.mxu0 %v180
  %470 = vmatpush.bf16.msra.mxu0 %v176
  %471 = vmatpush.bf16.msra.mxu0 %v172
  %472 = vmatpush.bf16.msra.mxu0 %v168
  %473 = vmatpush.bf16.msra.mxu0 %v164
  %474 = vmatpush.bf16.msra.mxu0 %v160
  %475 = vmatpush.bf16.msra.mxu0 %v156
  %476 = vmatpush.bf16.msra.mxu0 %v152
  %477 = vmatmul.bf16.gmra.mxu0 %v468
  %v478 = vpop.f32.mrf.mxu0
  %v479 = vadd.f32 0.0, %v478
  %v480 = vpop.f32.mrf.mxu0
  %481 = vdwg.mxu0
  %482 = vmatpush.bf16.msra.mxu0 %v181
  %483 = vmatpush.bf16.msra.mxu0 %v177
  %484 = vmatpush.bf16.msra.mxu0 %v173
  %485 = vmatpush.bf16.msra.mxu0 %v169
  %486 = vmatpush.bf16.msra.mxu0 %v165
  %487 = vmatpush.bf16.msra.mxu0 %v161
  %488 = vmatpush.bf16.msra.mxu0 %v157
  %489 = vmatpush.bf16.msra.mxu0 %v153
  %490 = vmatmul.bf16.gmra.mxu0 %v468
  %v491 = vpop.f32.mrf.mxu0
  %v492 = vadd.f32 0.0, %v491
  %v493 = vpop.f32.mrf.mxu0
  %494 = vdwg.mxu0
  %495 = vmatpush.bf16.msra.mxu0 %v182
  %496 = vmatpush.bf16.msra.mxu0 %v178
  %497 = vmatpush.bf16.msra.mxu0 %v174
  %498 = vmatpush.bf16.msra.mxu0 %v170
  %499 = vmatpush.bf16.msra.mxu0 %v166
  %500 = vmatpush.bf16.msra.mxu0 %v162
  %501 = vmatpush.bf16.msra.mxu0 %v158
  %502 = vmatpush.bf16.msra.mxu0 %v154
  %503 = vmatmul.bf16.gmra.mxu0 %v468
  %v504 = vpop.f32.mrf.mxu0
  %v505 = vadd.f32 0.0, %v504
  %v506 = vpop.f32.mrf.mxu0
  %507 = vdwg.mxu0
  %508 = vmatpush.bf16.msra.mxu0 %v183
  %509 = vmatpush.bf16.msra.mxu0 %v179
  %510 = vmatpush.bf16.msra.mxu0 %v175
  %511 = vmatpush.bf16.msra.mxu0 %v171
  %512 = vmatpush.bf16.msra.mxu0 %v167
  %513 = vmatpush.bf16.msra.mxu0 %v163
  %514 = vmatpush.bf16.msra.mxu0 %v159
  %515 = vmatpush.bf16.msra.mxu0 %v155
  %516 = vmatmul.bf16.gmra.mxu0 %v468
  %v517 = vpop.f32.mrf.mxu0
  %v518 = vadd.f32 0.0, %v517
  %v519 = vpop.f32.mrf.mxu0
  %520 = vdwg.mxu0
  %v521 = vadd.f32 %v464, %v479
  %v522 = vadd.f32 %v465, %v492
  %v523 = vadd.f32 %v466, %v505
  %v524 = vadd.f32 %v467, %v518
  %v525 = vxor.u32 %v521, 2147483648
  %v526 = vmul.f32 %v525, 1.442695
  %v527 = vpow.pop %v526
  %v528 = vadd.f32 %v527, 1.0
  %v529 = vrcp.pop %v528
  %v530 = vmul.f32 %v528, %v529
  %v531 = vsub.f32 1.0, %v530
  %v532 = vmul.f32 %v529, %v531
  %v533 = vadd.f32 %v529, %v532
  %vm534 = vweird.f32 %v528
  %vm535 = vweird.f32 %v529
  %vm536 = vmor %vm534, %vm535
  %v537 = vsel %vm536, %v529, %v533
  %v538 = vand.u32 2147483647, %v528
  %vm539 = vcmp.eq.f32.partialorder %v538, 8.507059e+37
  %v540 = vand.u32 %v528, 2147483648
  %v541 = vor.u32 1.1754944e-38, %v540
  %v542 = vsel %vm539, %v541, %v537
  %v543 = vmul.f32 1.0, %v542
  %v544 = vxor.u32 %v522, 2147483648
  %v545 = vmul.f32 %v544, 1.442695
  %v546 = vpow.pop %v545
  %v547 = vadd.f32 %v546, 1.0
  %v548 = vrcp.pop %v547
  %v549 = vmul.f32 %v547, %v548
  %v550 = vsub.f32 1.0, %v549
  %v551 = vmul.f32 %v548, %v550
  %v552 = vadd.f32 %v548, %v551
  %vm553 = vweird.f32 %v547
  %vm554 = vweird.f32 %v548
  %vm555 = vmor %vm553, %vm554
  %v556 = vsel %vm555, %v548, %v552
  %v557 = vand.u32 2147483647, %v547
  %vm558 = vcmp.eq.f32.partialorder %v557, 8.507059e+37
  %v559 = vand.u32 %v547, 2147483648
  %v560 = vor.u32 1.1754944e-38, %v559
  %v561 = vsel %vm558, %v560, %v556
  %v562 = vmul.f32 1.0, %v561
  %v563 = vtanh.pop %v523
  %v564 = vxor.u32 %v524, 2147483648
  %v565 = vmul.f32 %v564, 1.442695
  %v566 = vpow.pop %v565
  %v567 = vadd.f32 %v566, 1.0
  %v568 = vrcp.pop %v567
  %v569 = vmul.f32 %v567, %v568
  %v570 = vsub.f32 1.0, %v569
  %v571 = vmul.f32 %v568, %v570
  %v572 = vadd.f32 %v568, %v571
  %vm573 = vweird.f32 %v567
  %vm574 = vweird.f32 %v568
  %vm575 = vmor %vm573, %vm574
  %v576 = vsel %vm575, %v568, %v572
  %v577 = vand.u32 2147483647, %v567
  %vm578 = vcmp.eq.f32.partialorder %v577, 8.507059e+37
  %v579 = vand.u32 %v567, 2147483648
  %v580 = vor.u32 1.1754944e-38, %v579
  %v581 = vsel %vm578, %v580, %v576
  %v582 = vmul.f32 1.0, %v581
  %v583 = vmul.f32 %v562, %v458
  %v584 = vmul.f32 %v543, %v563
  %v585 = vadd.f32 %v583, %v584
  %v586 = vtanh.pop %v585
  %v587 = vmul.f32 %v582, %v586
  %s588 = scalar_lea.vmem %s2, 16
  %589 = vst [vmem:[%s588] sm:$0xff] %v587
  %s590 = scalar_lea.vmem %s0, 96
  %v591 = vld [vmem:[%s590] sm:$0xff]
  %v592 = vld [vmem:[%s590 + $0x8] sm:$0xff]
  %v593 = vld [vmem:[%s590 + $0x10] sm:$0xff]
  %v594 = vld [vmem:[%s590 + $0x18] sm:$0xff]
  %v595 = vpack.c.bf16 %v587, %v587
  %596 = vmatpush.bf16.msra.mxu0 %v180
  %597 = vmatpush.bf16.msra.mxu0 %v176
  %598 = vmatpush.bf16.msra.mxu0 %v172
  %599 = vmatpush.bf16.msra.mxu0 %v168
  %600 = vmatpush.bf16.msra.mxu0 %v164
  %601 = vmatpush.bf16.msra.mxu0 %v160
  %602 = vmatpush.bf16.msra.mxu0 %v156
  %603 = vmatpush.bf16.msra.mxu0 %v152
  %604 = vmatmul.bf16.gmra.mxu0 %v595
  %v605 = vpop.f32.mrf.mxu0
  %v606 = vadd.f32 0.0, %v605
  %v607 = vpop.f32.mrf.mxu0
  %608 = vdwg.mxu0
  %609 = vmatpush.bf16.msra.mxu0 %v181
  %610 = vmatpush.bf16.msra.mxu0 %v177
  %611 = vmatpush.bf16.msra.mxu0 %v173
  %612 = vmatpush.bf16.msra.mxu0 %v169
  %613 = vmatpush.bf16.msra.mxu0 %v165
  %614 = vmatpush.bf16.msra.mxu0 %v161
  %615 = vmatpush.bf16.msra.mxu0 %v157
  %616 = vmatpush.bf16.msra.mxu0 %v153
  %617 = vmatmul.bf16.gmra.mxu0 %v595
  %v618 = vpop.f32.mrf.mxu0
  %v619 = vadd.f32 0.0, %v618
  %v620 = vpop.f32.mrf.mxu0
  %621 = vdwg.mxu0
  %622 = vmatpush.bf16.msra.mxu0 %v182
  %623 = vmatpush.bf16.msra.mxu0 %v178
  %624 = vmatpush.bf16.msra.mxu0 %v174
  %625 = vmatpush.bf16.msra.mxu0 %v170
  %626 = vmatpush.bf16.msra.mxu0 %v166
  %627 = vmatpush.bf16.msra.mxu0 %v162
  %628 = vmatpush.bf16.msra.mxu0 %v158
  %629 = vmatpush.bf16.msra.mxu0 %v154
  %630 = vmatmul.bf16.gmra.mxu0 %v595
  %v631 = vpop.f32.mrf.mxu0
  %v632 = vadd.f32 0.0, %v631
  %v633 = vpop.f32.mrf.mxu0
  %634 = vdwg.mxu0
  %635 = vmatpush.bf16.msra.mxu0 %v183
  %636 = vmatpush.bf16.msra.mxu0 %v179
  %637 = vmatpush.bf16.msra.mxu0 %v175
  %638 = vmatpush.bf16.msra.mxu0 %v171
  %639 = vmatpush.bf16.msra.mxu0 %v167
  %640 = vmatpush.bf16.msra.mxu0 %v163
  %641 = vmatpush.bf16.msra.mxu0 %v159
  %642 = vmatpush.bf16.msra.mxu0 %v155
  %643 = vmatmul.bf16.gmra.mxu0 %v595
  %v644 = vpop.f32.mrf.mxu0
  %v645 = vadd.f32 0.0, %v644
  %v646 = vpop.f32.mrf.mxu0
  %647 = vdwg.mxu0
  %v648 = vadd.f32 %v591, %v606
  %v649 = vadd.f32 %v592, %v619
  %v650 = vadd.f32 %v593, %v632
  %v651 = vadd.f32 %v594, %v645
  %v652 = vxor.u32 %v648, 2147483648
  %v653 = vmul.f32 %v652, 1.442695
  %v654 = vpow.pop %v653
  %v655 = vadd.f32 %v654, 1.0
  %v656 = vrcp.pop %v655
  %v657 = vmul.f32 %v655, %v656
  %v658 = vsub.f32 1.0, %v657
  %v659 = vmul.f32 %v656, %v658
  %v660 = vadd.f32 %v656, %v659
  %vm661 = vweird.f32 %v655
  %vm662 = vweird.f32 %v656
  %vm663 = vmor %vm661, %vm662
  %v664 = vsel %vm663, %v656, %v660
  %v665 = vand.u32 2147483647, %v655
  %vm666 = vcmp.eq.f32.partialorder %v665, 8.507059e+37
  %v667 = vand.u32 %v655, 2147483648
  %v668 = vor.u32 1.1754944e-38, %v667
  %v669 = vsel %vm666, %v668, %v664
  %v670 = vmul.f32 1.0, %v669
  %v671 = vxor.u32 %v649, 2147483648
  %v672 = vmul.f32 %v671, 1.442695
  %v673 = vpow.pop %v672
  %v674 = vadd.f32 %v673, 1.0
  %v675 = vrcp.pop %v674
  %v676 = vmul.f32 %v674, %v675
  %v677 = vsub.f32 1.0, %v676
  %v678 = vmul.f32 %v675, %v677
  %v679 = vadd.f32 %v675, %v678
  %vm680 = vweird.f32 %v674
  %vm681 = vweird.f32 %v675
  %vm682 = vmor %vm680, %vm681
  %v683 = vsel %vm682, %v675, %v679
  %v684 = vand.u32 2147483647, %v674
  %vm685 = vcmp.eq.f32.partialorder %v684, 8.507059e+37
  %v686 = vand.u32 %v674, 2147483648
  %v687 = vor.u32 1.1754944e-38, %v686
  %v688 = vsel %vm685, %v687, %v683
  %v689 = vmul.f32 1.0, %v688
  %v690 = vtanh.pop %v650
  %v691 = vxor.u32 %v651, 2147483648
  %v692 = vmul.f32 %v691, 1.442695
  %v693 = vpow.pop %v692
  %v694 = vadd.f32 %v693, 1.0
  %v695 = vrcp.pop %v694
  %v696 = vmul.f32 %v694, %v695
  %v697 = vsub.f32 1.0, %v696
  %v698 = vmul.f32 %v695, %v697
  %v699 = vadd.f32 %v695, %v698
  %vm700 = vweird.f32 %v694
  %vm701 = vweird.f32 %v695
  %vm702 = vmor %vm700, %vm701
  %v703 = vsel %vm702, %v695, %v699
  %v704 = vand.u32 2147483647, %v694
  %vm705 = vcmp.eq.f32.partialorder %v704, 8.507059e+37
  %v706 = vand.u32 %v694, 2147483648
  %v707 = vor.u32 1.1754944e-38, %v706
  %v708 = vsel %vm705, %v707, %v703
  %v709 = vmul.f32 1.0, %v708
  %v710 = vmul.f32 %v689, %v585
  %v711 = vmul.f32 %v670, %v690
  %v712 = vadd.f32 %v710, %v711
  %v713 = vtanh.pop %v712
  %v714 = vmul.f32 %v709, %v713
  %s715 = scalar_lea.vmem %s2, 24
  %716 = vst [vmem:[%s715] sm:$0xff] %v714
  %s717 = scalar_lea.vmem %s0, 128
  %v718 = vld [vmem:[%s717] sm:$0xff]
  %v719 = vld [vmem:[%s717 + $0x8] sm:$0xff]
  %v720 = vld [vmem:[%s717 + $0x10] sm:$0xff]
  %v721 = vld [vmem:[%s717 + $0x18] sm:$0xff]
  %v722 = vpack.c.bf16 %v714, %v714
  %723 = vmatpush.bf16.msra.mxu0 %v180
  %724 = vmatpush.bf16.msra.mxu0 %v176
  %725 = vmatpush.bf16.msra.mxu0 %v172
  %726 = vmatpush.bf16.msra.mxu0 %v168
  %727 = vmatpush.bf16.msra.mxu0 %v164
  %728 = vmatpush.bf16.msra.mxu0 %v160
  %729 = vmatpush.bf16.msra.mxu0 %v156
  %730 = vmatpush.bf16.msra.mxu0 %v152
  %731 = vmatmul.bf16.gmra.mxu0 %v722
  %v732 = vpop.f32.mrf.mxu0
  %v733 = vadd.f32 0.0, %v732
  %v734 = vpop.f32.mrf.mxu0
  %735 = vdwg.mxu0
  %736 = vmatpush.bf16.msra.mxu0 %v181
  %737 = vmatpush.bf16.msra.mxu0 %v177
  %738 = vmatpush.bf16.msra.mxu0 %v173
  %739 = vmatpush.bf16.msra.mxu0 %v169
  %740 = vmatpush.bf16.msra.mxu0 %v165
  %741 = vmatpush.bf16.msra.mxu0 %v161
  %742 = vmatpush.bf16.msra.mxu0 %v157
  %743 = vmatpush.bf16.msra.mxu0 %v153
  %744 = vmatmul.bf16.gmra.mxu0 %v722
  %v745 = vpop.f32.mrf.mxu0
  %v746 = vadd.f32 0.0, %v745
  %v747 = vpop.f32.mrf.mxu0
  %748 = vdwg.mxu0
  %749 = vmatpush.bf16.msra.mxu0 %v182
  %750 = vmatpush.bf16.msra.mxu0 %v178
  %751 = vmatpush.bf16.msra.mxu0 %v174
  %752 = vmatpush.bf16.msra.mxu0 %v170
  %753 = vmatpush.bf16.msra.mxu0 %v166
  %754 = vmatpush.bf16.msra.mxu0 %v162
  %755 = vmatpush.bf16.msra.mxu0 %v158
  %756 = vmatpush.bf16.msra.mxu0 %v154
  %757 = vmatmul.bf16.gmra.mxu0 %v722
  %v758 = vpop.f32.mrf.mxu0
  %v759 = vadd.f32 0.0, %v758
  %v760 = vpop.f32.mrf.mxu0
  %761 = vdwg.mxu0
  %762 = vmatpush.bf16.msra.mxu0 %v183
  %763 = vmatpush.bf16.msra.mxu0 %v179
  %764 = vmatpush.bf16.msra.mxu0 %v175
  %765 = vmatpush.bf16.msra.mxu0 %v171
  %766 = vmatpush.bf16.msra.mxu0 %v167
  %767 = vmatpush.bf16.msra.mxu0 %v163
  %768 = vmatpush.bf16.msra.mxu0 %v159
  %769 = vmatpush.bf16.msra.mxu0 %v155
  %770 = vmatmul.bf16.gmra.mxu0 %v722
  %v771 = vpop.f32.mrf.mxu0
  %v772 = vadd.f32 0.0, %v771
  %v773 = vpop.f32.mrf.mxu0
  %774 = vdwg.mxu0
  %v775 = vadd.f32 %v718, %v733
  %v776 = vadd.f32 %v719, %v746
  %v777 = vadd.f32 %v720, %v759
  %v778 = vadd.f32 %v721, %v772
  %v779 = vxor.u32 %v775, 2147483648
  %v780 = vmul.f32 %v779, 1.442695
  %v781 = vpow.pop %v780
  %v782 = vadd.f32 %v781, 1.0
  %v783 = vrcp.pop %v782
  %v784 = vmul.f32 %v782, %v783
  %v785 = vsub.f32 1.0, %v784
  %v786 = vmul.f32 %v783, %v785
  %v787 = vadd.f32 %v783, %v786
  %vm788 = vweird.f32 %v782
  %vm789 = vweird.f32 %v783
  %vm790 = vmor %vm788, %vm789
  %v791 = vsel %vm790, %v783, %v787
  %v792 = vand.u32 2147483647, %v782
  %vm793 = vcmp.eq.f32.partialorder %v792, 8.507059e+37
  %v794 = vand.u32 %v782, 2147483648
  %v795 = vor.u32 1.1754944e-38, %v794
  %v796 = vsel %vm793, %v795, %v791
  %v797 = vmul.f32 1.0, %v796
  %v798 = vxor.u32 %v776, 2147483648
  %v799 = vmul.f32 %v798, 1.442695
  %v800 = vpow.pop %v799
  %v801 = vadd.f32 %v800, 1.0
  %v802 = vrcp.pop %v801
  %v803 = vmul.f32 %v801, %v802
  %v804 = vsub.f32 1.0, %v803
  %v805 = vmul.f32 %v802, %v804
  %v806 = vadd.f32 %v802, %v805
  %vm807 = vweird.f32 %v801
  %vm808 = vweird.f32 %v802
  %vm809 = vmor %vm807, %vm808
  %v810 = vsel %vm809, %v802, %v806
  %v811 = vand.u32 2147483647, %v801
  %vm812 = vcmp.eq.f32.partialorder %v811, 8.507059e+37
  %v813 = vand.u32 %v801, 2147483648
  %v814 = vor.u32 1.1754944e-38, %v813
  %v815 = vsel %vm812, %v814, %v810
  %v816 = vmul.f32 1.0, %v815
  %v817 = vtanh.pop %v777
  %v818 = vxor.u32 %v778, 2147483648
  %v819 = vmul.f32 %v818, 1.442695
  %v820 = vpow.pop %v819
  %v821 = vadd.f32 %v820, 1.0
  %v822 = vrcp.pop %v821
  %v823 = vmul.f32 %v821, %v822
  %v824 = vsub.f32 1.0, %v823
  %v825 = vmul.f32 %v822, %v824
  %v826 = vadd.f32 %v822, %v825
  %vm827 = vweird.f32 %v821
  %vm828 = vweird.f32 %v822
  %vm829 = vmor %vm827, %vm828
  %v830 = vsel %vm829, %v822, %v826
  %v831 = vand.u32 2147483647, %v821
  %vm832 = vcmp.eq.f32.partialorder %v831, 8.507059e+37
  %v833 = vand.u32 %v821, 2147483648
  %v834 = vor.u32 1.1754944e-38, %v833
  %v835 = vsel %vm832, %v834, %v830
  %v836 = vmul.f32 1.0, %v835
  %v837 = vmul.f32 %v816, %v712
  %v838 = vmul.f32 %v797, %v817
  %v839 = vadd.f32 %v837, %v838
  %v840 = vtanh.pop %v839
  %v841 = vmul.f32 %v836, %v840
  %s842 = scalar_lea.vmem %s2, 32
  %843 = vst [vmem:[%s842] sm:$0xff] %v841
  %s844 = scalar_lea.vmem %s0, 160
  %v845 = vld [vmem:[%s844] sm:$0xff]
  %v846 = vld [vmem:[%s844 + $0x8] sm:$0xff]
  %v847 = vld [vmem:[%s844 + $0x10] sm:$0xff]
  %v848 = vld [vmem:[%s844 + $0x18] sm:$0xff]
  %v849 = vpack.c.bf16 %v841, %v841
  %850 = vmatpush.bf16.msra.mxu0 %v180
  %851 = vmatpush.bf16.msra.mxu0 %v176
  %852 = vmatpush.bf16.msra.mxu0 %v172
  %853 = vmatpush.bf16.msra.mxu0 %v168
  %854 = vmatpush.bf16.msra.mxu0 %v164
  %855 = vmatpush.bf16.msra.mxu0 %v160
  %856 = vmatpush.bf16.msra.mxu0 %v156
  %857 = vmatpush.bf16.msra.mxu0 %v152
  %858 = vmatmul.bf16.gmra.mxu0 %v849
  %v859 = vpop.f32.mrf.mxu0
  %v860 = vadd.f32 0.0, %v859
  %v861 = vpop.f32.mrf.mxu0
  %862 = vdwg.mxu0
  %863 = vmatpush.bf16.msra.mxu0 %v181
  %864 = vmatpush.bf16.msra.mxu0 %v177
  %865 = vmatpush.bf16.msra.mxu0 %v173
  %866 = vmatpush.bf16.msra.mxu0 %v169
  %867 = vmatpush.bf16.msra.mxu0 %v165
  %868 = vmatpush.bf16.msra.mxu0 %v161
  %869 = vmatpush.bf16.msra.mxu0 %v157
  %870 = vmatpush.bf16.msra.mxu0 %v153
  %871 = vmatmul.bf16.gmra.mxu0 %v849
  %v872 = vpop.f32.mrf.mxu0
  %v873 = vadd.f32 0.0, %v872
  %v874 = vpop.f32.mrf.mxu0
  %875 = vdwg.mxu0
  %876 = vmatpush.bf16.msra.mxu0 %v182
  %877 = vmatpush.bf16.msra.mxu0 %v178
  %878 = vmatpush.bf16.msra.mxu0 %v174
  %879 = vmatpush.bf16.msra.mxu0 %v170
  %880 = vmatpush.bf16.msra.mxu0 %v166
  %881 = vmatpush.bf16.msra.mxu0 %v162
  %882 = vmatpush.bf16.msra.mxu0 %v158
  %883 = vmatpush.bf16.msra.mxu0 %v154
  %884 = vmatmul.bf16.gmra.mxu0 %v849
  %v885 = vpop.f32.mrf.mxu0
  %v886 = vadd.f32 0.0, %v885
  %v887 = vpop.f32.mrf.mxu0
  %888 = vdwg.mxu0
  %889 = vmatpush.bf16.msra.mxu0 %v183
  %890 = vmatpush.bf16.msra.mxu0 %v179
  %891 = vmatpush.bf16.msra.mxu0 %v175
  %892 = vmatpush.bf16.msra.mxu0 %v171
  %893 = vmatpush.bf16.msra.mxu0 %v167
  %894 = vmatpush.bf16.msra.mxu0 %v163
  %895 = vmatpush.bf16.msra.mxu0 %v159
  %896 = vmatpush.bf16.msra.mxu0 %v155
  %897 = vmatmul.bf16.gmra.mxu0 %v849
  %v898 = vpop.f32.mrf.mxu0
  %v899 = vadd.f32 0.0, %v898
  %v900 = vpop.f32.mrf.mxu0
  %901 = vdwg.mxu0
  %v902 = vadd.f32 %v845, %v860
  %v903 = vadd.f32 %v846, %v873
  %v904 = vadd.f32 %v847, %v886
  %v905 = vadd.f32 %v848, %v899
  %v906 = vxor.u32 %v902, 2147483648
  %v907 = vmul.f32 %v906, 1.442695
  %v908 = vpow.pop %v907
  %v909 = vadd.f32 %v908, 1.0
  %v910 = vrcp.pop %v909
  %v911 = vmul.f32 %v909, %v910
  %v912 = vsub.f32 1.0, %v911
  %v913 = vmul.f32 %v910, %v912
  %v914 = vadd.f32 %v910, %v913
  %vm915 = vweird.f32 %v909
  %vm916 = vweird.f32 %v910
  %vm917 = vmor %vm915, %vm916
  %v918 = vsel %vm917, %v910, %v914
  %v919 = vand.u32 2147483647, %v909
  %vm920 = vcmp.eq.f32.partialorder %v919, 8.507059e+37
  %v921 = vand.u32 %v909, 2147483648
  %v922 = vor.u32 1.1754944e-38, %v921
  %v923 = vsel %vm920, %v922, %v918
  %v924 = vmul.f32 1.0, %v923
  %v925 = vxor.u32 %v903, 2147483648
  %v926 = vmul.f32 %v925, 1.442695
  %v927 = vpow.pop %v926
  %v928 = vadd.f32 %v927, 1.0
  %v929 = vrcp.pop %v928
  %v930 = vmul.f32 %v928, %v929
  %v931 = vsub.f32 1.0, %v930
  %v932 = vmul.f32 %v929, %v931
  %v933 = vadd.f32 %v929, %v932
  %vm934 = vweird.f32 %v928
  %vm935 = vweird.f32 %v929
  %vm936 = vmor %vm934, %vm935
  %v937 = vsel %vm936, %v929, %v933
  %v938 = vand.u32 2147483647, %v928
  %vm939 = vcmp.eq.f32.partialorder %v938, 8.507059e+37
  %v940 = vand.u32 %v928, 2147483648
  %v941 = vor.u32 1.1754944e-38, %v940
  %v942 = vsel %vm939, %v941, %v937
  %v943 = vmul.f32 1.0, %v942
  %v944 = vtanh.pop %v904
  %v945 = vxor.u32 %v905, 2147483648
  %v946 = vmul.f32 %v945, 1.442695
  %v947 = vpow.pop %v946
  %v948 = vadd.f32 %v947, 1.0
  %v949 = vrcp.pop %v948
  %v950 = vmul.f32 %v948, %v949
  %v951 = vsub.f32 1.0, %v950
  %v952 = vmul.f32 %v949, %v951
  %v953 = vadd.f32 %v949, %v952
  %vm954 = vweird.f32 %v948
  %vm955 = vweird.f32 %v949
  %vm956 = vmor %vm954, %vm955
  %v957 = vsel %vm956, %v949, %v953
  %v958 = vand.u32 2147483647, %v948
  %vm959 = vcmp.eq.f32.partialorder %v958, 8.507059e+37
  %v960 = vand.u32 %v948, 2147483648
  %v961 = vor.u32 1.1754944e-38, %v960
  %v962 = vsel %vm959, %v961, %v957
  %v963 = vmul.f32 1.0, %v962
  %v964 = vmul.f32 %v943, %v839
  %v965 = vmul.f32 %v924, %v944
  %v966 = vadd.f32 %v964, %v965
  %v967 = vtanh.pop %v966
  %v968 = vmul.f32 %v963, %v967
  %s969 = scalar_lea.vmem %s2, 40
  %970 = vst [vmem:[%s969] sm:$0xff] %v968
  %s971 = scalar_lea.vmem %s0, 192
  %v972 = vld [vmem:[%s971] sm:$0xff]
  %v973 = vld [vmem:[%s971 + $0x8] sm:$0xff]
  %v974 = vld [vmem:[%s971 + $0x10] sm:$0xff]
  %v975 = vld [vmem:[%s971 + $0x18] sm:$0xff]
  %v976 = vpack.c.bf16 %v968, %v968
  %977 = vmatpush.bf16.msra.mxu0 %v180
  %978 = vmatpush.bf16.msra.mxu0 %v176
  %979 = vmatpush.bf16.msra.mxu0 %v172
  %980 = vmatpush.bf16.msra.mxu0 %v168
  %981 = vmatpush.bf16.msra.mxu0 %v164
  %982 = vmatpush.bf16.msra.mxu0 %v160
  %983 = vmatpush.bf16.msra.mxu0 %v156
  %984 = vmatpush.bf16.msra.mxu0 %v152
  %985 = vmatmul.bf16.gmra.mxu0 %v976
  %v986 = vpop.f32.mrf.mxu0
  %v987 = vadd.f32 0.0, %v986
  %v988 = vpop.f32.mrf.mxu0
  %989 = vdwg.mxu0
  %990 = vmatpush.bf16.msra.mxu0 %v181
  %991 = vmatpush.bf16.msra.mxu0 %v177
  %992 = vmatpush.bf16.msra.mxu0 %v173
  %993 = vmatpush.bf16.msra.mxu0 %v169
  %994 = vmatpush.bf16.msra.mxu0 %v165
  %995 = vmatpush.bf16.msra.mxu0 %v161
  %996 = vmatpush.bf16.msra.mxu0 %v157
  %997 = vmatpush.bf16.msra.mxu0 %v153
  %998 = vmatmul.bf16.gmra.mxu0 %v976
  %v999 = vpop.f32.mrf.mxu0
  %v1000 = vadd.f32 0.0, %v999
  %v1001 = vpop.f32.mrf.mxu0
  %1002 = vdwg.mxu0
  %1003 = vmatpush.bf16.msra.mxu0 %v182
  %1004 = vmatpush.bf16.msra.mxu0 %v178
  %1005 = vmatpush.bf16.msra.mxu0 %v174
  %1006 = vmatpush.bf16.msra.mxu0 %v170
  %1007 = vmatpush.bf16.msra.mxu0 %v166
  %1008 = vmatpush.bf16.msra.mxu0 %v162
  %1009 = vmatpush.bf16.msra.mxu0 %v158
  %1010 = vmatpush.bf16.msra.mxu0 %v154
  %1011 = vmatmul.bf16.gmra.mxu0 %v976
  %v1012 = vpop.f32.mrf.mxu0
  %v1013 = vadd.f32 0.0, %v1012
  %v1014 = vpop.f32.mrf.mxu0
  %1015 = vdwg.mxu0
  %1016 = vmatpush.bf16.msra.mxu0 %v183
  %1017 = vmatpush.bf16.msra.mxu0 %v179
  %1018 = vmatpush.bf16.msra.mxu0 %v175
  %1019 = vmatpush.bf16.msra.mxu0 %v171
  %1020 = vmatpush.bf16.msra.mxu0 %v167
  %1021 = vmatpush.bf16.msra.mxu0 %v163
  %1022 = vmatpush.bf16.msra.mxu0 %v159
  %1023 = vmatpush.bf16.msra.mxu0 %v155
  %1024 = vmatmul.bf16.gmra.mxu0 %v976
  %v1025 = vpop.f32.mrf.mxu0
  %v1026 = vadd.f32 0.0, %v1025
  %v1027 = vpop.f32.mrf.mxu0
  %1028 = vdwg.mxu0
  %v1029 = vadd.f32 %v972, %v987
  %v1030 = vadd.f32 %v973, %v1000
  %v1031 = vadd.f32 %v974, %v1013
  %v1032 = vadd.f32 %v975, %v1026
  %v1033 = vxor.u32 %v1029, 2147483648
  %v1034 = vmul.f32 %v1033, 1.442695
  %v1035 = vpow.pop %v1034
  %v1036 = vadd.f32 %v1035, 1.0
  %v1037 = vrcp.pop %v1036
  %v1038 = vmul.f32 %v1036, %v1037
  %v1039 = vsub.f32 1.0, %v1038
  %v1040 = vmul.f32 %v1037, %v1039
  %v1041 = vadd.f32 %v1037, %v1040
  %vm1042 = vweird.f32 %v1036
  %vm1043 = vweird.f32 %v1037
  %vm1044 = vmor %vm1042, %vm1043
  %v1045 = vsel %vm1044, %v1037, %v1041
  %v1046 = vand.u32 2147483647, %v1036
  %vm1047 = vcmp.eq.f32.partialorder %v1046, 8.507059e+37
  %v1048 = vand.u32 %v1036, 2147483648
  %v1049 = vor.u32 1.1754944e-38, %v1048
  %v1050 = vsel %vm1047, %v1049, %v1045
  %v1051 = vmul.f32 1.0, %v1050
  %v1052 = vxor.u32 %v1030, 2147483648
  %v1053 = vmul.f32 %v1052, 1.442695
  %v1054 = vpow.pop %v1053
  %v1055 = vadd.f32 %v1054, 1.0
  %v1056 = vrcp.pop %v1055
  %v1057 = vmul.f32 %v1055, %v1056
  %v1058 = vsub.f32 1.0, %v1057
  %v1059 = vmul.f32 %v1056, %v1058
  %v1060 = vadd.f32 %v1056, %v1059
  %vm1061 = vweird.f32 %v1055
  %vm1062 = vweird.f32 %v1056
  %vm1063 = vmor %vm1061, %vm1062
  %v1064 = vsel %vm1063, %v1056, %v1060
  %v1065 = vand.u32 2147483647, %v1055
  %vm1066 = vcmp.eq.f32.partialorder %v1065, 8.507059e+37
  %v1067 = vand.u32 %v1055, 2147483648
  %v1068 = vor.u32 1.1754944e-38, %v1067
  %v1069 = vsel %vm1066, %v1068, %v1064
  %v1070 = vmul.f32 1.0, %v1069
  %v1071 = vtanh.pop %v1031
  %v1072 = vxor.u32 %v1032, 2147483648
  %v1073 = vmul.f32 %v1072, 1.442695
  %v1074 = vpow.pop %v1073
  %v1075 = vadd.f32 %v1074, 1.0
  %v1076 = vrcp.pop %v1075
  %v1077 = vmul.f32 %v1075, %v1076
  %v1078 = vsub.f32 1.0, %v1077
  %v1079 = vmul.f32 %v1076, %v1078
  %v1080 = vadd.f32 %v1076, %v1079
  %vm1081 = vweird.f32 %v1075
  %vm1082 = vweird.f32 %v1076
  %vm1083 = vmor %vm1081, %vm1082
  %v1084 = vsel %vm1083, %v1076, %v1080
  %v1085 = vand.u32 2147483647, %v1075
  %vm1086 = vcmp.eq.f32.partialorder %v1085, 8.507059e+37
  %v1087 = vand.u32 %v1075, 2147483648
  %v1088 = vor.u32 1.1754944e-38, %v1087
  %v1089 = vsel %vm1086, %v1088, %v1084
  %v1090 = vmul.f32 1.0, %v1089
  %v1091 = vmul.f32 %v1070, %v966
  %v1092 = vmul.f32 %v1051, %v1071
  %v1093 = vadd.f32 %v1091, %v1092
  %v1094 = vtanh.pop %v1093
  %v1095 = vmul.f32 %v1090, %v1094
  %s1096 = scalar_lea.vmem %s2, 48
  %1097 = vst [vmem:[%s1096] sm:$0xff] %v1095
  %s1098 = scalar_lea.vmem %s0, 224
  %v1099 = vld [vmem:[%s1098] sm:$0xff]
  %v1100 = vld [vmem:[%s1098 + $0x8] sm:$0xff]
  %v1101 = vld [vmem:[%s1098 + $0x10] sm:$0xff]
  %v1102 = vld [vmem:[%s1098 + $0x18] sm:$0xff]
  %v1103 = vpack.c.bf16 %v1095, %v1095
  %1104 = vmatpush.bf16.msra.mxu0 %v180
  %1105 = vmatpush.bf16.msra.mxu0 %v176
  %1106 = vmatpush.bf16.msra.mxu0 %v172
  %1107 = vmatpush.bf16.msra.mxu0 %v168
  %1108 = vmatpush.bf16.msra.mxu0 %v164
  %1109 = vmatpush.bf16.msra.mxu0 %v160
  %1110 = vmatpush.bf16.msra.mxu0 %v156
  %1111 = vmatpush.bf16.msra.mxu0 %v152
  %1112 = vmatmul.bf16.gmra.mxu0 %v1103
  %v1113 = vpop.f32.mrf.mxu0
  %v1114 = vadd.f32 0.0, %v1113
  %v1115 = vpop.f32.mrf.mxu0
  %1116 = vdwg.mxu0
  %1117 = vmatpush.bf16.msra.mxu0 %v181
  %1118 = vmatpush.bf16.msra.mxu0 %v177
  %1119 = vmatpush.bf16.msra.mxu0 %v173
  %1120 = vmatpush.bf16.msra.mxu0 %v169
  %1121 = vmatpush.bf16.msra.mxu0 %v165
  %1122 = vmatpush.bf16.msra.mxu0 %v161
  %1123 = vmatpush.bf16.msra.mxu0 %v157
  %1124 = vmatpush.bf16.msra.mxu0 %v153
  %1125 = vmatmul.bf16.gmra.mxu0 %v1103
  %v1126 = vpop.f32.mrf.mxu0
  %v1127 = vadd.f32 0.0, %v1126
  %v1128 = vpop.f32.mrf.mxu0
  %1129 = vdwg.mxu0
  %1130 = vmatpush.bf16.msra.mxu0 %v182
  %1131 = vmatpush.bf16.msra.mxu0 %v178
  %1132 = vmatpush.bf16.msra.mxu0 %v174
  %1133 = vmatpush.bf16.msra.mxu0 %v170
  %1134 = vmatpush.bf16.msra.mxu0 %v166
  %1135 = vmatpush.bf16.msra.mxu0 %v162
  %1136 = vmatpush.bf16.msra.mxu0 %v158
  %1137 = vmatpush.bf16.msra.mxu0 %v154
  %1138 = vmatmul.bf16.gmra.mxu0 %v1103
  %v1139 = vpop.f32.mrf.mxu0
  %v1140 = vadd.f32 0.0, %v1139
  %v1141 = vpop.f32.mrf.mxu0
  %1142 = vdwg.mxu0
  %1143 = vmatpush.bf16.msra.mxu0 %v183
  %1144 = vmatpush.bf16.msra.mxu0 %v179
  %1145 = vmatpush.bf16.msra.mxu0 %v175
  %1146 = vmatpush.bf16.msra.mxu0 %v171
  %1147 = vmatpush.bf16.msra.mxu0 %v167
  %1148 = vmatpush.bf16.msra.mxu0 %v163
  %1149 = vmatpush.bf16.msra.mxu0 %v159
  %1150 = vmatpush.bf16.msra.mxu0 %v155
  %1151 = vmatmul.bf16.gmra.mxu0 %v1103
  %v1152 = vpop.f32.mrf.mxu0
  %v1153 = vadd.f32 0.0, %v1152
  %v1154 = vpop.f32.mrf.mxu0
  %1155 = vdwg.mxu0
  %v1156 = vadd.f32 %v1099, %v1114
  %v1157 = vadd.f32 %v1100, %v1127
  %v1158 = vadd.f32 %v1101, %v1140
  %v1159 = vadd.f32 %v1102, %v1153
  %v1160 = vxor.u32 %v1156, 2147483648
  %v1161 = vmul.f32 %v1160, 1.442695
  %v1162 = vpow.pop %v1161
  %v1163 = vadd.f32 %v1162, 1.0
  %v1164 = vrcp.pop %v1163
  %v1165 = vmul.f32 %v1163, %v1164
  %v1166 = vsub.f32 1.0, %v1165
  %v1167 = vmul.f32 %v1164, %v1166
  %v1168 = vadd.f32 %v1164, %v1167
  %vm1169 = vweird.f32 %v1163
  %vm1170 = vweird.f32 %v1164
  %vm1171 = vmor %vm1169, %vm1170
  %v1172 = vsel %vm1171, %v1164, %v1168
  %v1173 = vand.u32 2147483647, %v1163
  %vm1174 = vcmp.eq.f32.partialorder %v1173, 8.507059e+37
  %v1175 = vand.u32 %v1163, 2147483648
  %v1176 = vor.u32 1.1754944e-38, %v1175
  %v1177 = vsel %vm1174, %v1176, %v1172
  %v1178 = vmul.f32 1.0, %v1177
  %v1179 = vxor.u32 %v1157, 2147483648
  %v1180 = vmul.f32 %v1179, 1.442695
  %v1181 = vpow.pop %v1180
  %v1182 = vadd.f32 %v1181, 1.0
  %v1183 = vrcp.pop %v1182
  %v1184 = vmul.f32 %v1182, %v1183
  %v1185 = vsub.f32 1.0, %v1184
  %v1186 = vmul.f32 %v1183, %v1185
  %v1187 = vadd.f32 %v1183, %v1186
  %vm1188 = vweird.f32 %v1182
  %vm1189 = vweird.f32 %v1183
  %vm1190 = vmor %vm1188, %vm1189
  %v1191 = vsel %vm1190, %v1183, %v1187
  %v1192 = vand.u32 2147483647, %v1182
  %vm1193 = vcmp.eq.f32.partialorder %v1192, 8.507059e+37
  %v1194 = vand.u32 %v1182, 2147483648
  %v1195 = vor.u32 1.1754944e-38, %v1194
  %v1196 = vsel %vm1193, %v1195, %v1191
  %v1197 = vmul.f32 1.0, %v1196
  %v1198 = vtanh.pop %v1158
  %v1199 = vxor.u32 %v1159, 2147483648
  %v1200 = vmul.f32 %v1199, 1.442695
  %v1201 = vpow.pop %v1200
  %v1202 = vadd.f32 %v1201, 1.0
  %v1203 = vrcp.pop %v1202
  %v1204 = vmul.f32 %v1202, %v1203
  %v1205 = vsub.f32 1.0, %v1204
  %v1206 = vmul.f32 %v1203, %v1205
  %v1207 = vadd.f32 %v1203, %v1206
  %vm1208 = vweird.f32 %v1202
  %vm1209 = vweird.f32 %v1203
  %vm1210 = vmor %vm1208, %vm1209
  %v1211 = vsel %vm1210, %v1203, %v1207
  %v1212 = vand.u32 2147483647, %v1202
  %vm1213 = vcmp.eq.f32.partialorder %v1212, 8.507059e+37
  %v1214 = vand.u32 %v1202, 2147483648
  %v1215 = vor.u32 1.1754944e-38, %v1214
  %v1216 = vsel %vm1213, %v1215, %v1211
  %v1217 = vmul.f32 1.0, %v1216
  %v1218 = vmul.f32 %v1197, %v1093
  %v1219 = vmul.f32 %v1178, %v1198
  %v1220 = vadd.f32 %v1218, %v1219
  %v1221 = vtanh.pop %v1220
  %v1222 = vmul.f32 %v1217, %v1221
  %s1223 = scalar_lea.vmem %s2, 56
  %1224 = vst [vmem:[%s1223] sm:$0xff] %v1222
  %1225 = vst [vmem:[#allocation2] sm:$0xff] %v1222
  %1226 = vst [vmem:[#allocation3] sm:$0xff] %v1220
  // Predicated region
  $region14: #{decoder_rnn_forward.4} parent=0 // pred_check
    _
  $region15: #{decoder_rnn_forward.4} parent=0 // pred_check_branch
    %1228 = sbr.rel (0) target = $region17
  $region16: #{decoder_rnn_forward.4} parent=0 // pred_region
    _
  $region17: #{decoder_rnn_forward.4} parent=0 // pred_fallthru
    _
  // Predicated region
  $region18: #{decoder_rnn_forward.4} parent=0 // pred_check
    _
  $region19: #{decoder_rnn_forward.4} parent=0 // pred_check_branch
    %1230 = sbr.rel (0) target = $region21
  $region20: #{decoder_rnn_forward.4} parent=0 // pred_region
    _
  $region21: #{decoder_rnn_forward.4} parent=0 // pred_fallthru
    _

</llo_original>
